<compile_context>
chip_gen: v5e
topology: v5e:2x2
jax: 0.10.0
libtpu: 0.0.40
codegen_flags: <defaults>
</compile_context>

<pallas_src>
import jax
import jax.numpy as jnp
from jax import lax
from jax.experimental import pallas as pl
from jax.experimental.pallas import tpu as pltpu


def _global_attention_kernel(x_ref, wq_ref, wk_ref, wv_ref,
                             bq_ref, bk_ref, bv_ref, gamma_ref,
                             out_ref, k_scr, v_scr):
    # x_ref   : (N, Cp)   f32   full spatial extent for this batch element
    # wq/wk   : (Cp, Cqp) bf16 ; wv : (Cp, Cp) bf16   (zero-padded, pre-cast)
    # bq/bk   : (1, Cqp)  f32  ; bv : (1, Cp)  f32
    # gamma   : (1,)      f32   in SMEM
    # out_ref : (TQ, Cp)        query-row tile of the output
    # k_scr   : (N, Cqp)  bf16 ; v_scr : (N, Cp) bf16  (persist across the qt axis)
    qt = pl.program_id(1)
    tq = out_ref.shape[0]

    # ---- K / V projections: once per batch element (scratch persists across qt) ----
    @pl.when(qt == 0)
    def _():
        x_all = x_ref[...].astype(jnp.bfloat16)                               # (N, Cp)
        k = lax.dot_general(x_all, wk_ref[...], (((1,), (0,)), ((), ())),
                            preferred_element_type=jnp.float32) + bk_ref[...]
        v = lax.dot_general(x_all, wv_ref[...], (((1,), (0,)), ((), ())),
                            preferred_element_type=jnp.float32) + bv_ref[...]
        k_scr[...] = k.astype(jnp.bfloat16)
        v_scr[...] = v.astype(jnp.bfloat16)

    # ---- Q projection for this query-row tile ----
    row0 = pl.multiple_of(qt * tq, 8)
    x_tile = x_ref[pl.ds(row0, tq), :]                                        # (TQ, Cp) f32
    q = lax.dot_general(x_tile.astype(jnp.bfloat16), wq_ref[...],
                        (((1,), (0,)), ((), ())),
                        preferred_element_type=jnp.float32) + bq_ref[...]     # (TQ, Cqp)

    # ---- scores + row-wise softmax numerator (f32 elementwise math) ----
    s = lax.dot_general(q.astype(jnp.bfloat16), k_scr[...],
                        (((1,), (1,)), ((), ())),
                        preferred_element_type=jnp.float32)                   # (TQ, N)
    m = jnp.max(s, axis=-1, keepdims=True)
    p = jnp.exp(s - m)
    row_sum = jnp.sum(p, axis=-1, keepdims=True)

    # ---- unnormalized att @ V, then deferred normalization on the (TQ, Cp) output ----
    o = lax.dot_general(p.astype(jnp.bfloat16), v_scr[...],
                        (((1,), (0,)), ((), ())),
                        preferred_element_type=jnp.float32)                   # (TQ, Cp)
    o = o * pl.reciprocal(row_sum, approx=True)

    gamma = gamma_ref[0]
    out_ref[...] = (gamma * o + x_tile.astype(jnp.float32)).astype(out_ref.dtype)


def _round_up(v, m):
    return (v + m - 1) // m * m


def _pick_query_tile(n, target=128):
    """Largest multiple of 8 that divides n and is <= target; fallback: n (single tile)."""
    start = min(target, n)
    start -= start % 8
    for cand in range(start, 0, -8):
        if n % cand == 0:
            return cand
    return n


def global_attention(x_nchw, wq, bq, wk, bk, wv, bv, gamma, *, tq_target=128):
    """x_nchw: (B, C, W, H). wq/wk: (C, C//8), wv: (C, C), biases (1, *) or (*,), gamma (1,1)."""
    B, C, W, H = x_nchw.shape
    N = W * H
    Cq = wq.shape[1]

    LANE = 128
    cp = _round_up(C, LANE)       # lane-dense channel dim
    cqp = _round_up(Cq, LANE)     # lane-dense query/key projection dim
    tq = _pick_query_tile(N, tq_target)
    n_qt = N // tq

    # NCHW -> (B, N, C) channels-last (row-major over (W, H), matching torch .view), pad lanes.
    x_flat = jnp.transpose(x_nchw.reshape(B, C, N), (0, 2, 1))
    x_flat = jnp.pad(x_flat, ((0, 0), (0, 0), (0, cp - C)))

    f32, bf16 = jnp.float32, jnp.bfloat16
    wq_p = jnp.pad(wq, ((0, cp - C), (0, cqp - Cq))).astype(bf16)
    wk_p = jnp.pad(wk, ((0, cp - C), (0, cqp - Cq))).astype(bf16)
    wv_p = jnp.pad(wv, ((0, cp - C), (0, cp - C))).astype(bf16)
    bq_p = jnp.pad(bq.reshape(1, Cq).astype(f32), ((0, 0), (0, cqp - Cq)))
    bk_p = jnp.pad(bk.reshape(1, Cq).astype(f32), ((0, 0), (0, cqp - Cq)))
    bv_p = jnp.pad(bv.reshape(1, C).astype(f32), ((0, 0), (0, cp - C)))
    gamma_s = gamma.reshape((1,)).astype(f32)

    cost = pl.CostEstimate(
        flops=2 * B * (N * cp * (2 * cqp + cp) + N * N * (cqp + cp)),
        transcendentals=B * N * N,
        bytes_accessed=4 * 2 * B * N * cp + 2 * cp * (2 * cqp + cp),
    )

    out_flat = pl.pallas_call(
        _global_attention_kernel,
        out_shape=jax.ShapeDtypeStruct((B, N, cp), x_nchw.dtype),
        grid_spec=pltpu.PrefetchScalarGridSpec(
            num_scalar_prefetch=0,
            grid=(B, n_qt),
            in_specs=[
                pl.BlockSpec((None, N, cp), lambda b, qt: (b, 0, 0)),   # x: full N per batch, DMAed once per batch
                pl.BlockSpec((cp, cqp), lambda b, qt: (0, 0)),          # Wq (bf16, padded)
                pl.BlockSpec((cp, cqp), lambda b, qt: (0, 0)),          # Wk
                pl.BlockSpec((cp, cp), lambda b, qt: (0, 0)),           # Wv
                pl.BlockSpec((1, cqp), lambda b, qt: (0, 0)),           # bq
                pl.BlockSpec((1, cqp), lambda b, qt: (0, 0)),           # bk
                pl.BlockSpec((1, cp), lambda b, qt: (0, 0)),            # bv
                pl.BlockSpec(memory_space=pltpu.MemorySpace.SMEM),      # gamma on the scalar path
            ],
            out_specs=pl.BlockSpec((None, tq, cp), lambda b, qt: (b, qt, 0)),
            scratch_shapes=[
                pltpu.VMEM((N, cqp), jnp.bfloat16),   # K (once per batch element)
                pltpu.VMEM((N, cp), jnp.bfloat16),    # V (once per batch element)
            ],
        ),
        compiler_params=pltpu.CompilerParams(
            # batch is independent (megacore-shardable); the query-tile axis carries the
            # K/V scratch so it must stay "arbitrary".
            dimension_semantics=("parallel", "arbitrary")),
        cost_estimate=cost,
    )(x_flat, wq_p, wk_p, wv_p, bq_p, bk_p, bv_p, gamma_s)

    # (B, N, Cp) -> drop channel padding -> NCHW
    return jnp.transpose(out_flat[..., :C], (0, 2, 1)).reshape(B, C, W, H)


def _reference(x_nchw, wq, bq, wk, bk, wv, bv, gamma):
    """Pure-JAX f32 reference mirroring the PyTorch forward (for sanity checking)."""
    B, C, W, H = x_nchw.shape
    N = W * H
    xf = x_nchw.reshape(B, C, N).astype(jnp.float32)                 # (B, C, N)
    q = jnp.einsum('bcn,cd->bdn', xf, wq) + bq.reshape(1, -1, 1)     # (B, Cq, N)
    k = jnp.einsum('bcn,cd->bdn', xf, wk) + bk.reshape(1, -1, 1)
    v = jnp.einsum('bcn,cd->bdn', xf, wv) + bv.reshape(1, -1, 1)     # (B, C, N)
    energy = jnp.einsum('bdi,bdj->bij', q, k)                        # (B, N, N)
    att = jax.nn.softmax(energy, axis=-1)
    out = jnp.einsum('bcj,bij->bci', v, att)                         # (B, C, N)
    out = gamma.reshape(()) * out + xf
    return out.reshape(B, C, W, H).astype(x_nchw.dtype)


if __name__ == "__main__":
    B, C, W, H = 2, 32, 16, 16        # in_dim = 32 -> query/key dim = 4, N = 256
    Cq = C // 8

    key = jax.random.PRNGKey(0)
    kx, kq, kk, kv, kbq, kbk, kbv = jax.random.split(key, 7)

    x = jax.random.normal(kx, (B, C, W, H), dtype=jnp.float32)

    # Deterministic parameter init (Conv2d kernel_size=1 weights folded to (Cin, Cout) matmuls).
    wq = jax.random.normal(kq, (C, Cq), dtype=jnp.float32) * 0.1
    wk = jax.random.normal(kk, (C, Cq), dtype=jnp.float32) * 0.1
    wv = jax.random.normal(kv, (C, C), dtype=jnp.float32) * 0.1
    bq = jax.random.normal(kbq, (1, Cq), dtype=jnp.float32) * 0.1
    bk = jax.random.normal(kbk, (1, Cq), dtype=jnp.float32) * 0.1
    bv = jax.random.normal(kbv, (1, C), dtype=jnp.float32) * 0.1
    # PyTorch inits gamma to 0; use a nonzero deterministic value so the attention path is exercised.
    gamma = jnp.full((1, 1), 0.5, dtype=jnp.float32)

    out = global_attention(x, wq, bq, wk, bk, wv, bv, gamma)
    out = jax.block_until_ready(out)

    ref = _reference(x, wq, bq, wk, bk, wv, bv, gamma)
    assert out.shape == (B, C, W, H)
    # bf16 matmul operands + approx reciprocal vs an all-f32 reference -> loose tolerance.
    assert jnp.allclose(out, ref, atol=5e-2, rtol=5e-2), "mismatch vs reference"

    print("KERNEL_OK")
</pallas_src>

<mosaic_0001>
module attributes {stable_mosaic.version = 11 : i64} {
  func.func @_global_attention_kernel(%arg0: i32, %arg1: i32, %arg2: memref<1x256x128xf32, #tpu.memory_space<vmem>>, %arg3: memref<128x128xbf16, #tpu.memory_space<vmem>>, %arg4: memref<128x128xbf16, #tpu.memory_space<vmem>>, %arg5: memref<128x128xbf16, #tpu.memory_space<vmem>>, %arg6: memref<1x128xf32, #tpu.memory_space<vmem>>, %arg7: memref<1x128xf32, #tpu.memory_space<vmem>>, %arg8: memref<1x128xf32, #tpu.memory_space<vmem>>, %arg9: memref<1xf32, #tpu.memory_space<smem>>, %arg10: memref<1x128x128xf32, #tpu.memory_space<vmem>>, %arg11: memref<256x128xbf16, #tpu.memory_space<vmem>>, %arg12: memref<256x128xbf16, #tpu.memory_space<vmem>>) attributes {dimension_semantics = [#tpu.dimension_semantics<parallel>, #tpu.dimension_semantics<arbitrary>], iteration_bounds = array<i64: 2, 2>, scalar_prefetch = 0 : i64, scratch_operands = 2 : i64, tpu.core_type = #tpu.core_type<tc>, window_params = [{transform_indices = @transform_0, window_bounds = array<i64: 1, 256, 128>}, {pipeline_mode = #tpu.pipeline_mode<synchronous>, transform_indices = @transform_1, window_bounds = array<i64: 128, 128>}, {pipeline_mode = #tpu.pipeline_mode<synchronous>, transform_indices = @transform_2, window_bounds = array<i64: 128, 128>}, {pipeline_mode = #tpu.pipeline_mode<synchronous>, transform_indices = @transform_3, window_bounds = array<i64: 128, 128>}, {pipeline_mode = #tpu.pipeline_mode<synchronous>, transform_indices = @transform_4, window_bounds = array<i64: 1, 128>}, {pipeline_mode = #tpu.pipeline_mode<synchronous>, transform_indices = @transform_5, window_bounds = array<i64: 1, 128>}, {pipeline_mode = #tpu.pipeline_mode<synchronous>, transform_indices = @transform_6, window_bounds = array<i64: 1, 128>}, {transform_indices = @transform_7, window_bounds = array<i64: 1>}, {transform_indices = @transform_8, window_bounds = array<i64: 1, 128, 128>}]} {
    %c0_i32 = arith.constant 0 : i32
    %0 = arith.cmpi eq, %arg1, %c0_i32 : i32
    %1 = arith.extui %0 : i1 to i32
    %c0_i32_0 = arith.constant 0 : i32
    %2 = arith.cmpi ne, %1, %c0_i32_0 : i32
    scf.if %2 {
      %c0_18 = arith.constant 0 : index
      %c0_19 = arith.constant 0 : index
      %c0_20 = arith.constant 0 : index
      %37 = vector.load %arg2[%c0_18, %c0_19, %c0_20] : memref<1x256x128xf32, #tpu.memory_space<vmem>>, vector<1x256x128xf32>
      %38 = vector.shape_cast %37 : vector<1x256x128xf32> to vector<256x128xf32>
      %39 = arith.truncf %38 : vector<256x128xf32> to vector<256x128xbf16>
      %c0_21 = arith.constant 0 : index
      %c0_22 = arith.constant 0 : index
      %40 = vector.load %arg4[%c0_21, %c0_22] : memref<128x128xbf16, #tpu.memory_space<vmem>>, vector<128x128xbf16>
      %cst_23 = arith.constant dense<0.000000e+00> : vector<256x128xf32>
      %41 = tpu.matmul %39, %40, %cst_23 {dimension_numbers = #tpu.dot_dimension_numbers<[1], [0], [0], [1], [0, 0, 1, 1], [], []>} : vector<256x128xbf16>, vector<128x128xbf16>, vector<256x128xf32> -> vector<256x128xf32>
      %c0_24 = arith.constant 0 : index
      %c0_25 = arith.constant 0 : index
      %42 = vector.load %arg7[%c0_24, %c0_25] : memref<1x128xf32, #tpu.memory_space<vmem>>, vector<1x128xf32>
      %43 = vector.broadcast %42 : vector<1x128xf32> to vector<256x128xf32>
      %44 = arith.addf %41, %43 : vector<256x128xf32>
      %c0_26 = arith.constant 0 : index
      %c0_27 = arith.constant 0 : index
      %45 = vector.load %arg5[%c0_26, %c0_27] : memref<128x128xbf16, #tpu.memory_space<vmem>>, vector<128x128xbf16>
      %cst_28 = arith.constant dense<0.000000e+00> : vector<256x128xf32>
      %46 = tpu.matmul %39, %45, %cst_28 {dimension_numbers = #tpu.dot_dimension_numbers<[1], [0], [0], [1], [0, 0, 1, 1], [], []>} : vector<256x128xbf16>, vector<128x128xbf16>, vector<256x128xf32> -> vector<256x128xf32>
      %c0_29 = arith.constant 0 : index
      %c0_30 = arith.constant 0 : index
      %47 = vector.load %arg8[%c0_29, %c0_30] : memref<1x128xf32, #tpu.memory_space<vmem>>, vector<1x128xf32>
      %48 = vector.broadcast %47 : vector<1x128xf32> to vector<256x128xf32>
      %49 = arith.addf %46, %48 : vector<256x128xf32>
      %50 = arith.truncf %44 : vector<256x128xf32> to vector<256x128xbf16>
      %c0_31 = arith.constant 0 : index
      %c0_32 = arith.constant 0 : index
      %51 = vector.load %arg11[%c0_31, %c0_32] : memref<256x128xbf16, #tpu.memory_space<vmem>>, vector<256x128xbf16>
      tpu.vector_store %arg11[%c0_31, %c0_32], %50 {strides = array<i32>} : memref<256x128xbf16, #tpu.memory_space<vmem>>, vector<256x128xbf16>,
      %52 = arith.truncf %49 : vector<256x128xf32> to vector<256x128xbf16>
      %c0_33 = arith.constant 0 : index
      %c0_34 = arith.constant 0 : index
      %53 = vector.load %arg12[%c0_33, %c0_34] : memref<256x128xbf16, #tpu.memory_space<vmem>>, vector<256x128xbf16>
      tpu.vector_store %arg12[%c0_33, %c0_34], %52 {strides = array<i32>} : memref<256x128xbf16, #tpu.memory_space<vmem>>, vector<256x128xbf16>,
    } else {
    }
    %c128_i32 = arith.constant 128 : i32
    %3 = arith.muli %arg1, %c128_i32 : i32
    %4 = tpu.assume_multiple %3, 8 : i32
    %c0 = arith.constant 0 : index
    %5 = arith.index_cast %4 : i32 to index
    %c0_1 = arith.constant 0 : index
    %6 = vector.load %arg2[%c0, %5, %c0_1] : memref<1x256x128xf32, #tpu.memory_space<vmem>>, vector<1x128x128xf32>
    %7 = vector.shape_cast %6 : vector<1x128x128xf32> to vector<128x128xf32>
    %8 = arith.truncf %7 : vector<128x128xf32> to vector<128x128xbf16>
    %c0_2 = arith.constant 0 : index
    %c0_3 = arith.constant 0 : index
    %9 = vector.load %arg3[%c0_2, %c0_3] : memref<128x128xbf16, #tpu.memory_space<vmem>>, vector<128x128xbf16>
    %cst = arith.constant dense<0.000000e+00> : vector<128x128xf32>
    %10 = tpu.matmul %8, %9, %cst {dimension_numbers = #tpu.dot_dimension_numbers<[1], [0], [0], [1], [0, 0, 1, 1], [], []>} : vector<128x128xbf16>, vector<128x128xbf16>, vector<128x128xf32> -> vector<128x128xf32>
    %c0_4 = arith.constant 0 : index
    %c0_5 = arith.constant 0 : index
    %11 = vector.load %arg6[%c0_4, %c0_5] : memref<1x128xf32, #tpu.memory_space<vmem>>, vector<1x128xf32>
    %12 = vector.broadcast %11 : vector<1x128xf32> to vector<128x128xf32>
    %13 = arith.addf %10, %12 : vector<128x128xf32>
    %14 = arith.truncf %13 : vector<128x128xf32> to vector<128x128xbf16>
    %c0_6 = arith.constant 0 : index
    %c0_7 = arith.constant 0 : index
    %15 = vector.load %arg11[%c0_6, %c0_7] : memref<256x128xbf16, #tpu.memory_space<vmem>>, vector<256x128xbf16>
    %cst_8 = arith.constant dense<0.000000e+00> : vector<128x256xf32>
    %16 = tpu.matmul %14, %15, %cst_8 {dimension_numbers = #tpu.dot_dimension_numbers<[1], [1], [0], [0], [0, 0, 1, 0], [], []>} : vector<128x128xbf16>, vector<256x128xbf16>, vector<128x256xf32> -> vector<128x256xf32>
    %cst_9 = arith.constant dense<0xFF800000> : vector<128xf32>
    %17 = vector.multi_reduction <maximumf>, %16, %cst_9 [1] : vector<128x256xf32> to vector<128xf32>
    %18 = vector.shape_cast %17 : vector<128xf32> to vector<128x1xf32>
    %19 = vector.broadcast %18 : vector<128x1xf32> to vector<128x256xf32>
    %20 = arith.subf %16, %19 : vector<128x256xf32>
    %21 = math.exp %20 : vector<128x256xf32>
    %cst_10 = arith.constant dense<0.000000e+00> : vector<128xf32>
    %22 = vector.multi_reduction <add>, %21, %cst_10 [1] : vector<128x256xf32> to vector<128xf32>
    %23 = vector.shape_cast %22 : vector<128xf32> to vector<128x1xf32>
    %24 = arith.truncf %21 : vector<128x256xf32> to vector<128x256xbf16>
    %c0_11 = arith.constant 0 : index
    %c0_12 = arith.constant 0 : index
    %25 = vector.load %arg12[%c0_11, %c0_12] : memref<256x128xbf16, #tpu.memory_space<vmem>>, vector<256x128xbf16>
    %cst_13 = arith.constant dense<0.000000e+00> : vector<128x128xf32>
    %26 = tpu.matmul %24, %25, %cst_13 {dimension_numbers = #tpu.dot_dimension_numbers<[1], [0], [0], [1], [0, 0, 1, 1], [], []>} : vector<128x256xbf16>, vector<256x128xbf16>, vector<128x128xf32> -> vector<128x128xf32>
    %27 = tpu.reciprocal %23 {approx = true} : vector<128x1xf32> -> vector<128x1xf32>
    %28 = vector.broadcast %27 : vector<128x1xf32> to vector<128x128xf32>
    %29 = arith.mulf %26, %28 : vector<128x128xf32>
    %c0_14 = arith.constant 0 : index
    %30 = memref.load %arg9[%c0_14] : memref<1xf32, #tpu.memory_space<smem>>
    %31 = vector.broadcast %30 : f32 to vector<128x128xf32>
    %32 = arith.mulf %31, %29 : vector<128x128xf32>
    %33 = arith.addf %32, %7 : vector<128x128xf32>
    %c0_15 = arith.constant 0 : index
    %c0_16 = arith.constant 0 : index
    %c0_17 = arith.constant 0 : index
    %34 = vector.load %arg10[%c0_15, %c0_16, %c0_17] : memref<1x128x128xf32, #tpu.memory_space<vmem>>, vector<1x128x128xf32>
    %35 = vector.shape_cast %34 : vector<1x128x128xf32> to vector<128x128xf32>
    %36 = vector.shape_cast %33 : vector<128x128xf32> to vector<1x128x128xf32>
    tpu.vector_store %arg10[%c0_15, %c0_16, %c0_17], %36 {strides = array<i32>} : memref<1x128x128xf32, #tpu.memory_space<vmem>>, vector<1x128x128xf32>,
    return
  }
  func.func @transform_0(%arg0: i32, %arg1: i32) -> (i32, i32, i32) {
    %c0_i32 = arith.constant 0 : i32
    %c0_i32_0 = arith.constant 0 : i32
    %c0_i32_1 = arith.constant 0 : i32
    return %arg0, %c0_i32, %c0_i32_0 : i32, i32, i32
  }
  func.func @transform_1(%arg0: i32, %arg1: i32) -> (i32, i32) {
    %c0_i32 = arith.constant 0 : i32
    %c0_i32_0 = arith.constant 0 : i32
    %c0_i32_1 = arith.constant 0 : i32
    return %c0_i32, %c0_i32_0 : i32, i32
  }
  func.func @transform_2(%arg0: i32, %arg1: i32) -> (i32, i32) {
    %c0_i32 = arith.constant 0 : i32
    %c0_i32_0 = arith.constant 0 : i32
    %c0_i32_1 = arith.constant 0 : i32
    return %c0_i32, %c0_i32_0 : i32, i32
  }
  func.func @transform_3(%arg0: i32, %arg1: i32) -> (i32, i32) {
    %c0_i32 = arith.constant 0 : i32
    %c0_i32_0 = arith.constant 0 : i32
    %c0_i32_1 = arith.constant 0 : i32
    return %c0_i32, %c0_i32_0 : i32, i32
  }
  func.func @transform_4(%arg0: i32, %arg1: i32) -> (i32, i32) {
    %c0_i32 = arith.constant 0 : i32
    %c0_i32_0 = arith.constant 0 : i32
    %c0_i32_1 = arith.constant 0 : i32
    return %c0_i32, %c0_i32_0 : i32, i32
  }
  func.func @transform_5(%arg0: i32, %arg1: i32) -> (i32, i32) {
    %c0_i32 = arith.constant 0 : i32
    %c0_i32_0 = arith.constant 0 : i32
    %c0_i32_1 = arith.constant 0 : i32
    return %c0_i32, %c0_i32_0 : i32, i32
  }
  func.func @transform_6(%arg0: i32, %arg1: i32) -> (i32, i32) {
    %c0_i32 = arith.constant 0 : i32
    %c0_i32_0 = arith.constant 0 : i32
    %c0_i32_1 = arith.constant 0 : i32
    return %c0_i32, %c0_i32_0 : i32, i32
  }
  func.func @transform_7(%arg0: i32, %arg1: i32) -> i32 {
    %c0_i32 = arith.constant 0 : i32
    %c0_i32_0 = arith.constant 0 : i32
    return %c0_i32 : i32
  }
  func.func @transform_8(%arg0: i32, %arg1: i32) -> (i32, i32, i32) {
    %c0_i32 = arith.constant 0 : i32
    %c0_i32_0 = arith.constant 0 : i32
    return %arg0, %arg1, %c0_i32 : i32, i32, i32
  }
}

</mosaic_0001>

<llo_original>
// kernel: tpu_custom_call.1
$region0: #{tpu_custom_call.1}
  #allocation0 [shape = 'u32[]', space=smem, size = 0x4, offset = 0x4, fixed_abs, tag = 'smem constant byte address 0x4 - core index']
  #allocation1 [shape = 'u32[72,128]{1,0:T(1,128)}', space=vmem, size = 0x9000, scoped, tag = 'internal scratch']
  #allocation2 [shape = 'bf16[256,128]{1,0:T(8,128)(2,1)}', space=vmem, size = 0x10000, scoped, tag = 'scratch operand']
  #allocation3 [shape = 'bf16[256,128]{1,0:T(8,128)(2,1)}', space=vmem, size = 0x10000, scoped, tag = 'scratch operand']
  #allocation4 [shape = 'f32[1]{0:T(128)S(6)}', space=smem, size = 0x200, scoped, tag = 'scoped memory for tpu_custom_call.1']
  %s0 = inlined_call_operand.hbm [shape: f32[2,256,128], index: 0, kind: input, shape index: {}]
  %s1 = inlined_call_operand.hbm [shape: bf16[128,128], index: 1, kind: input, shape index: {}]
  %s2 = inlined_call_operand.hbm [shape: bf16[128,128], index: 2, kind: input, shape index: {}]
  %s3 = inlined_call_operand.hbm [shape: bf16[128,128], index: 3, kind: input, shape index: {}]
  %s4 = inlined_call_operand.vmem [shape: f32[1,128], index: 4, kind: input, shape index: {}]
  %s5 = inlined_call_operand.vmem [shape: f32[1,128], index: 5, kind: input, shape index: {}]
  %s6 = inlined_call_operand.vmem [shape: f32[1,128], index: 6, kind: input, shape index: {}]
  %s7 = inlined_call_operand.<no memory space> [shape: f32[1], index: 7, kind: input, shape index: {}]
  %s8 = inlined_call_operand.hbm [shape: f32[2,256,128], index: 8, kind: output, shape index: {}]
  %s9 = sld [smem:[#allocation0]]
  $region85: #{tpu_custom_call.1} parent=0
    _
  %s11 = ssub.s32 1, %s9
  %s12 = scalar_select 0, %s11, %s9
  %13 = sst [smem:[#allocation4]] %s7
  $region1: #{tpu_custom_call.1} parent=0
    #allocation5 [shape = 'u8[262144]{0}', space=vmem, size = 0x40000, scoped, tag = 'input window, operand 0']
    #allocation6 [shape = 's32[2]{0}', space=sflag, size = 0x8, scoped, tag = 'scoped memory for tpu_custom_call.1']
    #allocation7 [shape = 's32[2]{0}', space=sflag, size = 0x8, scoped, tag = 'scoped memory for tpu_custom_call.1']
    #allocation8 [shape = 'u8[32768]{0}', space=vmem, size = 0x8000, scoped, tag = 'input window, operand 1, single buffered']
    #allocation9 [shape = 's32[1]{0}', space=sflag, size = 0x4, scoped, tag = 'scoped memory for tpu_custom_call.1']
    #allocation10 [shape = 'u8[32768]{0}', space=vmem, size = 0x8000, scoped, tag = 'input window, operand 2, single buffered']
    #allocation11 [shape = 'u8[32768]{0}', space=vmem, size = 0x8000, scoped, tag = 'input window, operand 3, single buffered']
    #allocation12 [shape = 's32[1]{0}', space=sflag, size = 0x4, scoped, tag = 'scoped memory for tpu_custom_call.1']
    #allocation13 [shape = 'u8[131072]{0}', space=vmem, size = 0x20000, scoped, tag = 'output window, operand 0']
    %14 = vsyncpa [#allocation6], 0
    %s15 = scalar_lea.sflag [#allocation6], 1
    %16 = vsyncpa %s15, 0
    %17 = vsyncpa [#allocation9], 0
    %18 = vsyncpa [#allocation12], 0
    %19 = vsyncpa [#allocation7], 0
    %s20 = scalar_lea.sflag [#allocation7], 1
    %21 = vsyncpa %s20, 0
    loop: start=0, step=1, limit=6
    $region2: #{tpu_custom_call.1} parent=1 // loop_pre_header
      _
    $region3: #{tpu_custom_call.1} parent=1 // loop_header
      %s23 = sphi 0, %s27
      %p24 = scmp.ge.s32.totalorder %s23, 6
      %s30 = sphi 0, %s42
      %s31 = sphi 0, %s38
      %s32 = sphi 0, %s30
      %s33 = sphi 0, %s31
      %s34 = sphi 0, %s32
      %s35 = sphi 0, %s33
      %s45 = sphi 0, %s47
      %s48 = sphi 0, %s45
      %s49 = sphi 0, %s48
      %s65 = sphi 0, %s49
      %s69 = sphi 0, %s69
      %s71 = sphi 0, %s69
      %s72 = sphi 0, %s71
      %s86 = sphi 0, %s72
      %s90 = sphi 0, %s90
      %s92 = sphi 0, %s90
      %s93 = sphi 0, %s92
      %s107 = sphi 0, %s93
      %s111 = sphi 0, %s111
      %s113 = sphi 0, %s111
      %s114 = sphi 0, %s113
      %s128 = sphi 0, %s114
      %s132 = sphi 0, %s132
      %s134 = sphi 0, %s132
      %s135 = sphi 0, %s134
      %s149 = sphi 0, %s135
      %s153 = sphi 0, %s153
      %s155 = sphi 0, %s153
      %s156 = sphi 0, %s155
      %s170 = sphi 0, %s156
      %s174 = sphi 0, %s174
      %s176 = sphi 0, %s174
      %s177 = sphi 0, %s176
      %s191 = sphi 0, %s177
      %s195 = sphi 0, %s195
      %s197 = sphi 0, %s195
      %s198 = sphi 0, %s197
      %s212 = sphi 0, %s198
      %s220 = sphi 0, %s222
      %s223 = sphi 0, %s220
      %s224 = sphi 0, %s223
      %s240 = sphi 0, %s224
    $region4: #{tpu_custom_call.1} parent=1 // loop_header_branch
      %26 = sbr.rel (%p24) target = $region8
    $region5: #{tpu_custom_call.1} parent=1 // loop_body
      %s28 = ssub.s32 %s23, 1
      %s29 = ssub.s32 %s23, 2
      %s36 = sadd.s32 1, %s31
      %p37 = scmp.ge.s32.totalorder %s36, 2
      %s38 = scalar_select %p37, 0, %s36
      %s39 = sadd.s32 1, %s30
      %s40 = scalar_select %p37, %s39, %s30
      %p41 = scmp.ge.s32.totalorder %s40, 2
      %s42 = scalar_select %p41, 0, %s40
      %s43 = ssub.s32 %s30, %s42
      %p44 = scmp.eq.s32.totalorder %s43, 0
      %s46 = sadd.s32 %s45, 1
      %s47 = scalar_select %p44, %s45, %s46
      %p50 = pneg %p44
      %p51 = scmp.eq.s32.totalorder %s23, 3
      %p52 = por %p50, %p51
      %p53 = scmp.ne.s32.totalorder %s45, %s48
      %p54 = scmp.eq.s32.totalorder %s23, 0
      %p55 = por %p53, %p54
      %p56 = scmp.ne.s32.totalorder %s45, %s48
      %p57 = scmp.eq.s32.totalorder %s28, 3
      %p58 = por %p56, %p57
      %p59 = scmp.ne.s32.totalorder %s48, %s49
      %p60 = scmp.eq.s32.totalorder %s28, 0
      %p61 = por %p59, %p60
      %p62 = scmp.ne.s32.totalorder %s48, %s49
      %p63 = scmp.eq.s32.totalorder %s29, 3
      %p64 = por %p62, %p63
      %p66 = scmp.ne.s32.totalorder %s49, %s65
      %p67 = scmp.eq.s32.totalorder %s29, 0
      %p68 = por %p66, %p67
      %s70 = sadd.s32 %s69, 1
      %p73 = scmp.eq.s32.totalorder %s23, 3
      %p74 = scmp.ne.s32.totalorder %s69, %s71
      %p75 = scmp.eq.s32.totalorder %s23, 0
      %p76 = por %p74, %p75
      %p77 = scmp.ne.s32.totalorder %s69, %s71
      %p78 = scmp.eq.s32.totalorder %s28, 3
      %p79 = por %p77, %p78
      %p80 = scmp.ne.s32.totalorder %s71, %s72
      %p81 = scmp.eq.s32.totalorder %s28, 0
      %p82 = por %p80, %p81
      %p83 = scmp.ne.s32.totalorder %s71, %s72
      %p84 = scmp.eq.s32.totalorder %s29, 3
      %p85 = por %p83, %p84
      %p87 = scmp.ne.s32.totalorder %s72, %s86
      %p88 = scmp.eq.s32.totalorder %s29, 0
      %p89 = por %p87, %p88
      %s91 = sadd.s32 %s90, 1
      %p94 = scmp.eq.s32.totalorder %s23, 3
      %p95 = scmp.ne.s32.totalorder %s90, %s92
      %p96 = scmp.eq.s32.totalorder %s23, 0
      %p97 = por %p95, %p96
      %p98 = scmp.ne.s32.totalorder %s90, %s92
      %p99 = scmp.eq.s32.totalorder %s28, 3
      %p100 = por %p98, %p99
      %p101 = scmp.ne.s32.totalorder %s92, %s93
      %p102 = scmp.eq.s32.totalorder %s28, 0
      %p103 = por %p101, %p102
      %p104 = scmp.ne.s32.totalorder %s92, %s93
      %p105 = scmp.eq.s32.totalorder %s29, 3
      %p106 = por %p104, %p105
      %p108 = scmp.ne.s32.totalorder %s93, %s107
      %p109 = scmp.eq.s32.totalorder %s29, 0
      %p110 = por %p108, %p109
      %s112 = sadd.s32 %s111, 1
      %p115 = scmp.eq.s32.totalorder %s23, 3
      %p116 = scmp.ne.s32.totalorder %s111, %s113
      %p117 = scmp.eq.s32.totalorder %s23, 0
      %p118 = por %p116, %p117
      %p119 = scmp.ne.s32.totalorder %s111, %s113
      %p120 = scmp.eq.s32.totalorder %s28, 3
      %p121 = por %p119, %p120
      %p122 = scmp.ne.s32.totalorder %s113, %s114
      %p123 = scmp.eq.s32.totalorder %s28, 0
      %p124 = por %p122, %p123
      %p125 = scmp.ne.s32.totalorder %s113, %s114
      %p126 = scmp.eq.s32.totalorder %s29, 3
      %p127 = por %p125, %p126
      %p129 = scmp.ne.s32.totalorder %s114, %s128
      %p130 = scmp.eq.s32.totalorder %s29, 0
      %p131 = por %p129, %p130
      %s133 = sadd.s32 %s132, 1
      %p136 = scmp.eq.s32.totalorder %s23, 3
      %p137 = scmp.ne.s32.totalorder %s132, %s134
      %p138 = scmp.eq.s32.totalorder %s23, 0
      %p139 = por %p137, %p138
      %p140 = scmp.ne.s32.totalorder %s132, %s134
      %p141 = scmp.eq.s32.totalorder %s28, 3
      %p142 = por %p140, %p141
      %p143 = scmp.ne.s32.totalorder %s134, %s135
      %p144 = scmp.eq.s32.totalorder %s28, 0
      %p145 = por %p143, %p144
      %p146 = scmp.ne.s32.totalorder %s134, %s135
      %p147 = scmp.eq.s32.totalorder %s29, 3
      %p148 = por %p146, %p147
      %p150 = scmp.ne.s32.totalorder %s135, %s149
      %p151 = scmp.eq.s32.totalorder %s29, 0
      %p152 = por %p150, %p151
      %s154 = sadd.s32 %s153, 1
      %p157 = scmp.eq.s32.totalorder %s23, 3
      %p158 = scmp.ne.s32.totalorder %s153, %s155
      %p159 = scmp.eq.s32.totalorder %s23, 0
      %p160 = por %p158, %p159
      %p161 = scmp.ne.s32.totalorder %s153, %s155
      %p162 = scmp.eq.s32.totalorder %s28, 3
      %p163 = por %p161, %p162
      %p164 = scmp.ne.s32.totalorder %s155, %s156
      %p165 = scmp.eq.s32.totalorder %s28, 0
      %p166 = por %p164, %p165
      %p167 = scmp.ne.s32.totalorder %s155, %s156
      %p168 = scmp.eq.s32.totalorder %s29, 3
      %p169 = por %p167, %p168
      %p171 = scmp.ne.s32.totalorder %s156, %s170
      %p172 = scmp.eq.s32.totalorder %s29, 0
      %p173 = por %p171, %p172
      %s175 = sadd.s32 %s174, 1
      %p178 = scmp.eq.s32.totalorder %s23, 3
      %p179 = scmp.ne.s32.totalorder %s174, %s176
      %p180 = scmp.eq.s32.totalorder %s23, 0
      %p181 = por %p179, %p180
      %p182 = scmp.ne.s32.totalorder %s174, %s176
      %p183 = scmp.eq.s32.totalorder %s28, 3
      %p184 = por %p182, %p183
      %p185 = scmp.ne.s32.totalorder %s176, %s177
      %p186 = scmp.eq.s32.totalorder %s28, 0
      %p187 = por %p185, %p186
      %p188 = scmp.ne.s32.totalorder %s176, %s177
      %p189 = scmp.eq.s32.totalorder %s29, 3
      %p190 = por %p188, %p189
      %p192 = scmp.ne.s32.totalorder %s177, %s191
      %p193 = scmp.eq.s32.totalorder %s29, 0
      %p194 = por %p192, %p193
      %s196 = sadd.s32 %s195, 1
      %p199 = scmp.eq.s32.totalorder %s23, 3
      %p200 = scmp.ne.s32.totalorder %s195, %s197
      %p201 = scmp.eq.s32.totalorder %s23, 0
      %p202 = por %p200, %p201
      %p203 = scmp.ne.s32.totalorder %s195, %s197
      %p204 = scmp.eq.s32.totalorder %s28, 3
      %p205 = por %p203, %p204
      %p206 = scmp.ne.s32.totalorder %s197, %s198
      %p207 = scmp.eq.s32.totalorder %s28, 0
      %p208 = por %p206, %p207
      %p209 = scmp.ne.s32.totalorder %s197, %s198
      %p210 = scmp.eq.s32.totalorder %s29, 3
      %p211 = por %p209, %p210
      %p213 = scmp.ne.s32.totalorder %s198, %s212
      %p214 = scmp.eq.s32.totalorder %s29, 0
      %p215 = por %p213, %p214
      %s216 = ssub.s32 %s30, %s42
      %s217 = ssub.s32 %s31, %s38
      %s218 = sor.u32 %s216, %s217
      %p219 = scmp.eq.s32.totalorder %s218, 0
      %s221 = sadd.s32 %s220, 1
      %s222 = scalar_select %p219, %s220, %s221
      %p225 = pneg %p219
      %p226 = scmp.eq.s32.totalorder %s23, 3
      %p227 = por %p225, %p226
      %p228 = scmp.ne.s32.totalorder %s220, %s223
      %p229 = scmp.eq.s32.totalorder %s23, 0
      %p230 = por %p228, %p229
      %p231 = scmp.ne.s32.totalorder %s220, %s223
      %p232 = scmp.eq.s32.totalorder %s28, 3
      %p233 = por %p231, %p232
      %p234 = scmp.ne.s32.totalorder %s223, %s224
      %p235 = scmp.eq.s32.totalorder %s28, 0
      %p236 = por %p234, %p235
      %p237 = scmp.ne.s32.totalorder %s223, %s224
      %p238 = scmp.eq.s32.totalorder %s29, 3
      %p239 = por %p237, %p238
      %p241 = scmp.ne.s32.totalorder %s224, %s240
      %p242 = scmp.eq.s32.totalorder %s29, 0
      %p243 = por %p241, %p242
      %p244 = scmp.le.s32.totalorder 1, %s23
      %p245 = scmp.lt.s32.totalorder %s23, 5
      %p246 = pnand %p244, %p245
      %p247 = pneg %p246
      // Predicated region
      $region9: #{tpu_custom_call.1} parent=5 // pred_check
        _
      $region10: #{tpu_custom_call.1} parent=5 // pred_check_branch
        %249 = sbr.rel (%p246) target = $region12
      $region11: #{tpu_custom_call.1} parent=5 // pred_region
        %s250 = ssub.s32 %s23, 1
        // Predicated region
        $region13: #{tpu_custom_call.1} parent=11 // pred_check
          %p251 = pneg %p82
        $region14: #{tpu_custom_call.1} parent=11 // pred_check_branch
          %253 = sbr.rel (%p251) target = $region16
        $region15: #{tpu_custom_call.1} parent=11 // pred_region
          %255 = vsyncadd [#allocation9], 0
          %s256 = sshll.u32 %s1, 4
          %s257 = int_to_ptr.hbm [resolvable:$true] %s256
          %s258 = sshll.u32 [#allocation8], 4
          %s259 = int_to_ptr.vmem [resolvable:$true] %s258
          %264 = dma.hbm_to_vmem [thread:$0]  %s257, 1024, %s259, [#allocation9], 64, 64, 4
        $region16: #{tpu_custom_call.1} parent=11 // pred_fallthru
          _
        // Predicated region
        $region17: #{tpu_custom_call.1} parent=11 // pred_check
          %p265 = pneg %p103
        $region18: #{tpu_custom_call.1} parent=11 // pred_check_branch
          %267 = sbr.rel (%p265) target = $region20
        $region19: #{tpu_custom_call.1} parent=11 // pred_region
          %269 = vsyncadd [#allocation9], 0
          %s270 = sshll.u32 %s2, 4
          %s271 = int_to_ptr.hbm [resolvable:$true] %s270
          %s272 = sshll.u32 [#allocation10], 4
          %s273 = int_to_ptr.vmem [resolvable:$true] %s272
          %278 = dma.hbm_to_vmem [thread:$0]  %s271, 1024, %s273, [#allocation9], 64, 64, 4
        $region20: #{tpu_custom_call.1} parent=11 // pred_fallthru
          _
        // Predicated region
        $region21: #{tpu_custom_call.1} parent=11 // pred_check
          %p279 = pneg %p124
        $region22: #{tpu_custom_call.1} parent=11 // pred_check_branch
          %281 = sbr.rel (%p279) target = $region24
        $region23: #{tpu_custom_call.1} parent=11 // pred_region
          %283 = vsyncadd [#allocation12], 0
          %s284 = sshll.u32 %s3, 4
          %s285 = int_to_ptr.hbm [resolvable:$true] %s284
          %s286 = sshll.u32 [#allocation11], 4
          %s287 = int_to_ptr.vmem [resolvable:$true] %s286
          %292 = dma.hbm_to_vmem [thread:$0]  %s285, 1024, %s287, [#allocation12], 64, 64, 4
        $region24: #{tpu_custom_call.1} parent=11 // pred_fallthru
          _
        // Predicated region
        $region25: #{tpu_custom_call.1} parent=11 // pred_check
          %p293 = pneg %p145
        $region26: #{tpu_custom_call.1} parent=11 // pred_check_branch
          %295 = sbr.rel (%p293) target = $region28
        $region27: #{tpu_custom_call.1} parent=11 // pred_region
          _
        $region28: #{tpu_custom_call.1} parent=11 // pred_fallthru
          _
        // Predicated region
        $region29: #{tpu_custom_call.1} parent=11 // pred_check
          %p296 = pneg %p166
        $region30: #{tpu_custom_call.1} parent=11 // pred_check_branch
          %298 = sbr.rel (%p296) target = $region32
        $region31: #{tpu_custom_call.1} parent=11 // pred_region
          _
        $region32: #{tpu_custom_call.1} parent=11 // pred_fallthru
          _
        // Predicated region
        $region33: #{tpu_custom_call.1} parent=11 // pred_check
          %p299 = pneg %p187
        $region34: #{tpu_custom_call.1} parent=11 // pred_check_branch
          %301 = sbr.rel (%p299) target = $region36
        $region35: #{tpu_custom_call.1} parent=11 // pred_region
          _
        $region36: #{tpu_custom_call.1} parent=11 // pred_fallthru
          _
        // Predicated region
        $region37: #{tpu_custom_call.1} parent=11 // pred_check
          %p302 = pneg %p208
        $region38: #{tpu_custom_call.1} parent=11 // pred_check_branch
          %304 = sbr.rel (%p302) target = $region40
        $region39: #{tpu_custom_call.1} parent=11 // pred_region
          _
        $region40: #{tpu_custom_call.1} parent=11 // pred_fallthru
          _
      $region12: #{tpu_custom_call.1} parent=5 // pred_fallthru
        _
      %p305 = scmp.lt.s32.totalorder %s23, 4
      // Predicated region
      $region41: #{tpu_custom_call.1} parent=5 // pred_check
        %p306 = pneg %p305
      $region42: #{tpu_custom_call.1} parent=5 // pred_check_branch
        %308 = sbr.rel (%p306) target = $region44
      $region43: #{tpu_custom_call.1} parent=5 // pred_region
        // Predicated region
        $region45: #{tpu_custom_call.1} parent=43 // pred_check
          %p309 = pneg %p55
        $region46: #{tpu_custom_call.1} parent=43 // pred_check_branch
          %311 = sbr.rel (%p309) target = $region48
        $region47: #{tpu_custom_call.1} parent=43 // pred_region
          %s312 = sand.u32 %s45, 1
          %s313 = scalar_lea.sflag [#allocation6], %s312
          %s314 = sand.u32 %s45, 1
          %s315 = smul.addr %s314, 256
          %s316 = scalar_lea.vmem [#allocation5], %s315
          %318 = vsyncadd %s313, 0
          %s319 = smul.addr %s30, 32
          %s320 = smul.addr %s319, 8
          %s321 = scalar_lea.hbm %s0, %s320
          %s322 = sshll.u32 %s321, 4
          %s323 = int_to_ptr.hbm [resolvable:$true] %s322
          %s324 = sshll.u32 %s316, 4
          %s325 = int_to_ptr.vmem [resolvable:$true] %s324
          %330 = dma.hbm_to_vmem [thread:$0]  %s323, 4096, %s325, %s313, 128, 128, 8
        $region48: #{tpu_custom_call.1} parent=43 // pred_fallthru
          _
      $region44: #{tpu_custom_call.1} parent=5 // pred_fallthru
        _
      %p331 = scmp.le.s32.totalorder 1, %s23
      %p332 = scmp.lt.s32.totalorder %s23, 5
      %p333 = pnand %p331, %p332
      %p334 = pneg %p333
      // Predicated region
      $region49: #{tpu_custom_call.1} parent=5 // pred_check
        _
      $region50: #{tpu_custom_call.1} parent=5 // pred_check_branch
        %336 = sbr.rel (%p333) target = $region52
      $region51: #{tpu_custom_call.1} parent=5 // pred_region
        %s337 = ssub.s32 %s23, 1
        %s338 = sand.u32 %s48, 1
        %s339 = scalar_lea.sflag [#allocation6], %s338
        %s340 = sand.u32 %s48, 1
        %s341 = smul.addr %s340, 256
        %s342 = scalar_lea.vmem [#allocation5], %s341
        // Predicated region
        $region53: #{tpu_custom_call.1} parent=51 // pred_check
          %p343 = pneg %p61
        $region54: #{tpu_custom_call.1} parent=51 // pred_check_branch
          %345 = sbr.rel (%p343) target = $region56
        $region55: #{tpu_custom_call.1} parent=51 // pred_region
          %347 = dma.done %s339, 4096
        $region56: #{tpu_custom_call.1} parent=51 // pred_fallthru
          _
        // Predicated region
        $region57: #{tpu_custom_call.1} parent=51 // pred_check
          %p348 = pneg %p82
        $region58: #{tpu_custom_call.1} parent=51 // pred_check_branch
          %350 = sbr.rel (%p348) target = $region60
        $region59: #{tpu_custom_call.1} parent=51 // pred_region
          %352 = dma.done [#allocation9], 1024
        $region60: #{tpu_custom_call.1} parent=51 // pred_fallthru
          _
        // Predicated region
        $region61: #{tpu_custom_call.1} parent=51 // pred_check
          %p353 = pneg %p103
        $region62: #{tpu_custom_call.1} parent=51 // pred_check_branch
          %355 = sbr.rel (%p353) target = $region64
        $region63: #{tpu_custom_call.1} parent=51 // pred_region
          %357 = dma.done [#allocation9], 1024
        $region64: #{tpu_custom_call.1} parent=51 // pred_fallthru
          _
        // Predicated region
        $region65: #{tpu_custom_call.1} parent=51 // pred_check
          %p358 = pneg %p124
        $region66: #{tpu_custom_call.1} parent=51 // pred_check_branch
          %360 = sbr.rel (%p358) target = $region68
        $region67: #{tpu_custom_call.1} parent=51 // pred_region
          %362 = dma.done [#allocation12], 1024
        $region68: #{tpu_custom_call.1} parent=51 // pred_fallthru
          _
        %s363 = sand.u32 %s48, 1
        %s364 = scalar_lea.sflag [#allocation6], %s363
        %s365 = sand.u32 %s48, 1
        %s366 = smul.addr %s365, 256
        %s367 = scalar_lea.vmem [#allocation5], %s366
        %p368 = pneg %p61
        %p369 = pneg %p58
        %p370 = pneg %p82
        %p371 = pneg %p79
        %p372 = pneg %p103
        %p373 = pneg %p100
        %p374 = pneg %p124
        %p375 = pneg %p121
        %p376 = pneg %p145
        %p377 = pneg %p142
        %p378 = pneg %p166
        %p379 = pneg %p163
        %p380 = pneg %p187
        %p381 = pneg %p184
        %p382 = pneg %p208
        %p383 = pneg %p205
        %p384 = pneg %p236
        %p385 = pneg %p233
        %s386 = sand.u32 %s223, 1
        %s387 = scalar_lea.sflag [#allocation7], %s386
        %s388 = sand.u32 %s223, 1
        %s389 = smul.addr %s388, 128
        %s390 = scalar_lea.vmem [#allocation13], %s389
        %s391 = smul.u32 16, %s33
        %p392 = scmp.eq.s32.totalorder %s33, 0
        // Predicated region
        $region69: #{tpu_custom_call.1} parent=51 // pred_check
          %p393 = pneg %p392
        $region70: #{tpu_custom_call.1} parent=51 // pred_check_branch
          %395 = sbr.rel (%p393) target = $region72
        $region71: #{tpu_custom_call.1} parent=51 // pred_region
          %v396 = vld [vmem:[%s342] sm:$0xff]
          %v397 = vld [vmem:[%s342 + $0x8] sm:$0xff]
          %v398 = vld [vmem:[%s342 + $0x10] sm:$0xff]
          %v399 = vld [vmem:[%s342 + $0x18] sm:$0xff]
          %v400 = vld [vmem:[%s342 + $0x20] sm:$0xff]
          %v401 = vld [vmem:[%s342 + $0x28] sm:$0xff]
          %v402 = vld [vmem:[%s342 + $0x30] sm:$0xff]
          %v403 = vld [vmem:[%s342 + $0x38] sm:$0xff]
          %v404 = vld [vmem:[%s342 + $0x40] sm:$0xff]
          %v405 = vld [vmem:[%s342 + $0x48] sm:$0xff]
          %v406 = vld [vmem:[%s342 + $0x50] sm:$0xff]
          %v407 = vld [vmem:[%s342 + $0x58] sm:$0xff]
          %v408 = vld [vmem:[%s342 + $0x60] sm:$0xff]
          %v409 = vld [vmem:[%s342 + $0x68] sm:$0xff]
          %v410 = vld [vmem:[%s342 + $0x70] sm:$0xff]
          %v411 = vld [vmem:[%s342 + $0x78] sm:$0xff]
          %v412 = vld [vmem:[%s342 + $0x80] sm:$0xff]
          %v413 = vld [vmem:[%s342 + $0x88] sm:$0xff]
          %v414 = vld [vmem:[%s342 + $0x90] sm:$0xff]
          %v415 = vld [vmem:[%s342 + $0x98] sm:$0xff]
          %v416 = vld [vmem:[%s342 + $0xa0] sm:$0xff]
          %v417 = vld [vmem:[%s342 + $0xa8] sm:$0xff]
          %v418 = vld [vmem:[%s342 + $0xb0] sm:$0xff]
          %v419 = vld [vmem:[%s342 + $0xb8] sm:$0xff]
          %v420 = vld [vmem:[%s342 + $0xc0] sm:$0xff]
          %v421 = vld [vmem:[%s342 + $0xc8] sm:$0xff]
          %v422 = vld [vmem:[%s342 + $0xd0] sm:$0xff]
          %v423 = vld [vmem:[%s342 + $0xd8] sm:$0xff]
          %v424 = vld [vmem:[%s342 + $0xe0] sm:$0xff]
          %v425 = vld [vmem:[%s342 + $0xe8] sm:$0xff]
          %v426 = vld [vmem:[%s342 + $0xf0] sm:$0xff]
          %v427 = vld [vmem:[%s342 + $0xf8] sm:$0xff]
          %v428 = vpack.c.bf16 %v397, %v396
          %v429 = vpack.c.bf16 %v399, %v398
          %v430 = vpack.c.bf16 %v401, %v400
          %v431 = vpack.c.bf16 %v403, %v402
          %v432 = vpack.c.bf16 %v405, %v404
          %v433 = vpack.c.bf16 %v407, %v406
          %v434 = vpack.c.bf16 %v409, %v408
          %v435 = vpack.c.bf16 %v411, %v410
          %v436 = vpack.c.bf16 %v413, %v412
          %v437 = vpack.c.bf16 %v415, %v414
          %v438 = vpack.c.bf16 %v417, %v416
          %v439 = vpack.c.bf16 %v419, %v418
          %v440 = vpack.c.bf16 %v421, %v420
          %v441 = vpack.c.bf16 %v423, %v422
          %v442 = vpack.c.bf16 %v425, %v424
          %v443 = vpack.c.bf16 %v427, %v426
          %v444 = vld [vmem:[#allocation10] sm:$0xf]
          %v445 = vld [vmem:[#allocation10 + $0x4] sm:$0xf]
          %v446 = vld [vmem:[#allocation10 + $0x8] sm:$0xf]
          %v447 = vld [vmem:[#allocation10 + $0xc] sm:$0xf]
          %v448 = vld [vmem:[#allocation10 + $0x10] sm:$0xf]
          %v449 = vld [vmem:[#allocation10 + $0x14] sm:$0xf]
          %v450 = vld [vmem:[#allocation10 + $0x18] sm:$0xf]
          %v451 = vld [vmem:[#allocation10 + $0x1c] sm:$0xf]
          %v452 = vld [vmem:[#allocation10 + $0x20] sm:$0xf]
          %v453 = vld [vmem:[#allocation10 + $0x24] sm:$0xf]
          %v454 = vld [vmem:[#allocation10 + $0x28] sm:$0xf]
          %v455 = vld [vmem:[#allocation10 + $0x2c] sm:$0xf]
          %v456 = vld [vmem:[#allocation10 + $0x30] sm:$0xf]
          %v457 = vld [vmem:[#allocation10 + $0x34] sm:$0xf]
          %v458 = vld [vmem:[#allocation10 + $0x38] sm:$0xf]
          %v459 = vld [vmem:[#allocation10 + $0x3c] sm:$0xf]
          %v460 = vld [vmem:[%s5] sm:$0x1]
          %v462 = vperm.slane %v460, 0
          %v480 = vunpack.c.l.b16 %v444
          %v481 = vunpack.c.l.b16 %v445
          %v482 = vunpack.c.l.b16 %v446
          %v483 = vunpack.c.l.b16 %v447
          %v484 = vunpack.c.l.b16 %v448
          %v485 = vunpack.c.l.b16 %v449
          %v486 = vunpack.c.l.b16 %v450
          %v487 = vunpack.c.l.b16 %v451
          %v488 = vunpack.c.l.b16 %v452
          %v489 = vunpack.c.l.b16 %v453
          %v490 = vunpack.c.l.b16 %v454
          %v491 = vunpack.c.l.b16 %v455
          %v492 = vunpack.c.l.b16 %v456
          %v493 = vunpack.c.l.b16 %v457
          %v494 = vunpack.c.l.b16 %v458
          %v495 = vunpack.c.l.b16 %v459
          %v496 = vpack.c.b16 %v481, %v480
          %v497 = vpack.c.b16 %v483, %v482
          %v498 = vpack.c.b16 %v485, %v484
          %v499 = vpack.c.b16 %v487, %v486
          %v500 = vpack.c.b16 %v489, %v488
          %v501 = vpack.c.b16 %v491, %v490
          %v502 = vpack.c.b16 %v493, %v492
          %v503 = vpack.c.b16 %v495, %v494
          %512 = vmatpush.bf16.msra.mxu0 %v503
          %513 = vmatpush.bf16.msra.mxu0 %v502
          %514 = vmatpush.bf16.msra.mxu0 %v501
          %515 = vmatpush.bf16.msra.mxu0 %v500
          %516 = vmatpush.bf16.msra.mxu0 %v499
          %517 = vmatpush.bf16.msra.mxu0 %v498
          %518 = vmatpush.bf16.msra.mxu0 %v497
          %519 = vmatpush.bf16.msra.mxu0 %v496
          %520 = vmatmul.bf16.gmra.mxu0 %v428
          %v521 = vpop.f32.mrf.mxu0
          %v522 = vadd.f32 %v462, %v521
          %v523 = vpop.f32.mrf.mxu0
          %v524 = vadd.f32 %v462, %v523
          %525 = vmatmul.bf16.gmra.mxu0 %v429
          %v526 = vpop.f32.mrf.mxu0
          %v527 = vadd.f32 %v462, %v526
          %v528 = vpop.f32.mrf.mxu0
          %v529 = vadd.f32 %v462, %v528
          %530 = vmatmul.bf16.gmra.mxu0 %v430
          %v531 = vpop.f32.mrf.mxu0
          %v532 = vadd.f32 %v462, %v531
          %v533 = vpop.f32.mrf.mxu0
          %v534 = vadd.f32 %v462, %v533
          %535 = vmatmul.bf16.gmra.mxu0 %v431
          %v536 = vpop.f32.mrf.mxu0
          %v537 = vadd.f32 %v462, %v536
          %v538 = vpop.f32.mrf.mxu0
          %v539 = vadd.f32 %v462, %v538
          %540 = vmatmul.bf16.gmra.mxu0 %v432
          %v541 = vpop.f32.mrf.mxu0
          %v542 = vadd.f32 %v462, %v541
          %v543 = vpop.f32.mrf.mxu0
          %v544 = vadd.f32 %v462, %v543
          %545 = vmatmul.bf16.gmra.mxu0 %v433
          %v546 = vpop.f32.mrf.mxu0
          %v547 = vadd.f32 %v462, %v546
          %v548 = vpop.f32.mrf.mxu0
          %v549 = vadd.f32 %v462, %v548
          %550 = vmatmul.bf16.gmra.mxu0 %v434
          %v551 = vpop.f32.mrf.mxu0
          %v552 = vadd.f32 %v462, %v551
          %v553 = vpop.f32.mrf.mxu0
          %v554 = vadd.f32 %v462, %v553
          %555 = vmatmul.bf16.gmra.mxu0 %v435
          %v556 = vpop.f32.mrf.mxu0
          %v557 = vadd.f32 %v462, %v556
          %v558 = vpop.f32.mrf.mxu0
          %v559 = vadd.f32 %v462, %v558
          %560 = vmatmul.bf16.gmra.mxu0 %v436
          %v561 = vpop.f32.mrf.mxu0
          %v562 = vadd.f32 %v462, %v561
          %v563 = vpop.f32.mrf.mxu0
          %v564 = vadd.f32 %v462, %v563
          %565 = vmatmul.bf16.gmra.mxu0 %v437
          %v566 = vpop.f32.mrf.mxu0
          %v567 = vadd.f32 %v462, %v566
          %v568 = vpop.f32.mrf.mxu0
          %v569 = vadd.f32 %v462, %v568
          %570 = vmatmul.bf16.gmra.mxu0 %v438
          %v571 = vpop.f32.mrf.mxu0
          %v572 = vadd.f32 %v462, %v571
          %v573 = vpop.f32.mrf.mxu0
          %v574 = vadd.f32 %v462, %v573
          %575 = vmatmul.bf16.gmra.mxu0 %v439
          %v576 = vpop.f32.mrf.mxu0
          %v577 = vadd.f32 %v462, %v576
          %v578 = vpop.f32.mrf.mxu0
          %v579 = vadd.f32 %v462, %v578
          %580 = vmatmul.bf16.gmra.mxu0 %v440
          %v581 = vpop.f32.mrf.mxu0
          %v582 = vadd.f32 %v462, %v581
          %v583 = vpop.f32.mrf.mxu0
          %v584 = vadd.f32 %v462, %v583
          %585 = vmatmul.bf16.gmra.mxu0 %v441
          %v586 = vpop.f32.mrf.mxu0
          %v587 = vadd.f32 %v462, %v586
          %v588 = vpop.f32.mrf.mxu0
          %v589 = vadd.f32 %v462, %v588
          %590 = vmatmul.bf16.gmra.mxu0 %v442
          %v591 = vpop.f32.mrf.mxu0
          %v592 = vadd.f32 %v462, %v591
          %v593 = vpop.f32.mrf.mxu0
          %v594 = vadd.f32 %v462, %v593
          %595 = vmatmul.bf16.gmra.mxu0 %v443
          %v596 = vpop.f32.mrf.mxu0
          %v597 = vadd.f32 %v462, %v596
          %v598 = vpop.f32.mrf.mxu0
          %v599 = vadd.f32 %v462, %v598
          %600 = vdwg.mxu0
          %v601 = vld [vmem:[#allocation11] sm:$0xf]
          %v602 = vld [vmem:[#allocation11 + $0x4] sm:$0xf]
          %v603 = vld [vmem:[#allocation11 + $0x8] sm:$0xf]
          %v604 = vld [vmem:[#allocation11 + $0xc] sm:$0xf]
          %v605 = vld [vmem:[#allocation11 + $0x10] sm:$0xf]
          %v606 = vld [vmem:[#allocation11 + $0x14] sm:$0xf]
          %v607 = vld [vmem:[#allocation11 + $0x18] sm:$0xf]
          %v608 = vld [vmem:[#allocation11 + $0x1c] sm:$0xf]
          %v609 = vld [vmem:[#allocation11 + $0x20] sm:$0xf]
          %v610 = vld [vmem:[#allocation11 + $0x24] sm:$0xf]
          %v611 = vld [vmem:[#allocation11 + $0x28] sm:$0xf]
          %v612 = vld [vmem:[#allocation11 + $0x2c] sm:$0xf]
          %v613 = vld [vmem:[#allocation11 + $0x30] sm:$0xf]
          %v614 = vld [vmem:[#allocation11 + $0x34] sm:$0xf]
          %v615 = vld [vmem:[#allocation11 + $0x38] sm:$0xf]
          %v616 = vld [vmem:[#allocation11 + $0x3c] sm:$0xf]
          %v617 = vld [vmem:[%s6] sm:$0x1]
          %v619 = vperm.slane %v617, 0
          %v637 = vunpack.c.l.b16 %v601
          %v638 = vunpack.c.l.b16 %v602
          %v639 = vunpack.c.l.b16 %v603
          %v640 = vunpack.c.l.b16 %v604
          %v641 = vunpack.c.l.b16 %v605
          %v642 = vunpack.c.l.b16 %v606
          %v643 = vunpack.c.l.b16 %v607
          %v644 = vunpack.c.l.b16 %v608
          %v645 = vunpack.c.l.b16 %v609
          %v646 = vunpack.c.l.b16 %v610
          %v647 = vunpack.c.l.b16 %v611
          %v648 = vunpack.c.l.b16 %v612
          %v649 = vunpack.c.l.b16 %v613
          %v650 = vunpack.c.l.b16 %v614
          %v651 = vunpack.c.l.b16 %v615
          %v652 = vunpack.c.l.b16 %v616
          %v653 = vpack.c.b16 %v638, %v637
          %v654 = vpack.c.b16 %v640, %v639
          %v655 = vpack.c.b16 %v642, %v641
          %v656 = vpack.c.b16 %v644, %v643
          %v657 = vpack.c.b16 %v646, %v645
          %v658 = vpack.c.b16 %v648, %v647
          %v659 = vpack.c.b16 %v650, %v649
          %v660 = vpack.c.b16 %v652, %v651
          %669 = vmatpush.bf16.msra.mxu0 %v660
          %670 = vmatpush.bf16.msra.mxu0 %v659
          %671 = vmatpush.bf16.msra.mxu0 %v658
          %672 = vmatpush.bf16.msra.mxu0 %v657
          %673 = vmatpush.bf16.msra.mxu0 %v656
          %674 = vmatpush.bf16.msra.mxu0 %v655
          %675 = vmatpush.bf16.msra.mxu0 %v654
          %676 = vmatpush.bf16.msra.mxu0 %v653
          %677 = vmatmul.bf16.gmra.mxu0 %v428
          %v678 = vpop.f32.mrf.mxu0
          %v679 = vadd.f32 %v619, %v678
          %v680 = vpop.f32.mrf.mxu0
          %v681 = vadd.f32 %v619, %v680
          %682 = vmatmul.bf16.gmra.mxu0 %v429
          %v683 = vpop.f32.mrf.mxu0
          %v684 = vadd.f32 %v619, %v683
          %v685 = vpop.f32.mrf.mxu0
          %v686 = vadd.f32 %v619, %v685
          %687 = vmatmul.bf16.gmra.mxu0 %v430
          %v688 = vpop.f32.mrf.mxu0
          %v689 = vadd.f32 %v619, %v688
          %v690 = vpop.f32.mrf.mxu0
          %v691 = vadd.f32 %v619, %v690
          %692 = vmatmul.bf16.gmra.mxu0 %v431
          %v693 = vpop.f32.mrf.mxu0
          %v694 = vadd.f32 %v619, %v693
          %v695 = vpop.f32.mrf.mxu0
          %v696 = vadd.f32 %v619, %v695
          %697 = vmatmul.bf16.gmra.mxu0 %v432
          %v698 = vpop.f32.mrf.mxu0
          %v699 = vadd.f32 %v619, %v698
          %v700 = vpop.f32.mrf.mxu0
          %v701 = vadd.f32 %v619, %v700
          %702 = vmatmul.bf16.gmra.mxu0 %v433
          %v703 = vpop.f32.mrf.mxu0
          %v704 = vadd.f32 %v619, %v703
          %v705 = vpop.f32.mrf.mxu0
          %v706 = vadd.f32 %v619, %v705
          %707 = vmatmul.bf16.gmra.mxu0 %v434
          %v708 = vpop.f32.mrf.mxu0
          %v709 = vadd.f32 %v619, %v708
          %v710 = vpop.f32.mrf.mxu0
          %v711 = vadd.f32 %v619, %v710
          %712 = vmatmul.bf16.gmra.mxu0 %v435
          %v713 = vpop.f32.mrf.mxu0
          %v714 = vadd.f32 %v619, %v713
          %v715 = vpop.f32.mrf.mxu0
          %v716 = vadd.f32 %v619, %v715
          %717 = vmatmul.bf16.gmra.mxu0 %v436
          %v718 = vpop.f32.mrf.mxu0
          %v719 = vadd.f32 %v619, %v718
          %v720 = vpop.f32.mrf.mxu0
          %v721 = vadd.f32 %v619, %v720
          %722 = vmatmul.bf16.gmra.mxu0 %v437
          %v723 = vpop.f32.mrf.mxu0
          %v724 = vadd.f32 %v619, %v723
          %v725 = vpop.f32.mrf.mxu0
          %v726 = vadd.f32 %v619, %v725
          %727 = vmatmul.bf16.gmra.mxu0 %v438
          %v728 = vpop.f32.mrf.mxu0
          %v729 = vadd.f32 %v619, %v728
          %v730 = vpop.f32.mrf.mxu0
          %v731 = vadd.f32 %v619, %v730
          %732 = vmatmul.bf16.gmra.mxu0 %v439
          %v733 = vpop.f32.mrf.mxu0
          %v734 = vadd.f32 %v619, %v733
          %v735 = vpop.f32.mrf.mxu0
          %v736 = vadd.f32 %v619, %v735
          %737 = vmatmul.bf16.gmra.mxu0 %v440
          %v738 = vpop.f32.mrf.mxu0
          %v739 = vadd.f32 %v619, %v738
          %v740 = vpop.f32.mrf.mxu0
          %v741 = vadd.f32 %v619, %v740
          %742 = vmatmul.bf16.gmra.mxu0 %v441
          %v743 = vpop.f32.mrf.mxu0
          %v744 = vadd.f32 %v619, %v743
          %v745 = vpop.f32.mrf.mxu0
          %v746 = vadd.f32 %v619, %v745
          %747 = vmatmul.bf16.gmra.mxu0 %v442
          %v748 = vpop.f32.mrf.mxu0
          %v749 = vadd.f32 %v619, %v748
          %v750 = vpop.f32.mrf.mxu0
          %v751 = vadd.f32 %v619, %v750
          %752 = vmatmul.bf16.gmra.mxu0 %v443
          %v753 = vpop.f32.mrf.mxu0
          %v754 = vadd.f32 %v619, %v753
          %v755 = vpop.f32.mrf.mxu0
          %v756 = vadd.f32 %v619, %v755
          %757 = vdwg.mxu0
          %v758 = vpack.c.bf16 %v522, %v522
          %v759 = vpack.c.bf16 %v524, %v524
          %v760 = vpack.c.bf16 %v527, %v527
          %v761 = vpack.c.bf16 %v529, %v529
          %v762 = vpack.c.bf16 %v532, %v532
          %v763 = vpack.c.bf16 %v534, %v534
          %v764 = vpack.c.bf16 %v537, %v537
          %v765 = vpack.c.bf16 %v539, %v539
          %v766 = vpack.c.bf16 %v542, %v542
          %v767 = vpack.c.bf16 %v544, %v544
          %v768 = vpack.c.bf16 %v547, %v547
          %v769 = vpack.c.bf16 %v549, %v549
          %v770 = vpack.c.bf16 %v552, %v552
          %v771 = vpack.c.bf16 %v554, %v554
          %v772 = vpack.c.bf16 %v557, %v557
          %v773 = vpack.c.bf16 %v559, %v559
          %v774 = vpack.c.bf16 %v562, %v562
          %v775 = vpack.c.bf16 %v564, %v564
          %v776 = vpack.c.bf16 %v567, %v567
          %v777 = vpack.c.bf16 %v569, %v569
          %v778 = vpack.c.bf16 %v572, %v572
          %v779 = vpack.c.bf16 %v574, %v574
          %v780 = vpack.c.bf16 %v577, %v577
          %v781 = vpack.c.bf16 %v579, %v579
          %v782 = vpack.c.bf16 %v582, %v582
          %v783 = vpack.c.bf16 %v584, %v584
          %v784 = vpack.c.bf16 %v587, %v587
          %v785 = vpack.c.bf16 %v589, %v589
          %v786 = vpack.c.bf16 %v592, %v592
          %v787 = vpack.c.bf16 %v594, %v594
          %v788 = vpack.c.bf16 %v597, %v597
          %v789 = vpack.c.bf16 %v599, %v599
          %790 = vst [vmem:[#allocation2] sm:$0xf] %v758
          %791 = vst [vmem:[#allocation2 + $0x4] sm:$0xf] %v759
          %792 = vst [vmem:[#allocation2 + $0x8] sm:$0xf] %v760
          %793 = vst [vmem:[#allocation2 + $0xc] sm:$0xf] %v761
          %794 = vst [vmem:[#allocation2 + $0x10] sm:$0xf] %v762
          %795 = vst [vmem:[#allocation2 + $0x14] sm:$0xf] %v763
          %796 = vst [vmem:[#allocation2 + $0x18] sm:$0xf] %v764
          %797 = vst [vmem:[#allocation2 + $0x1c] sm:$0xf] %v765
          %798 = vst [vmem:[#allocation2 + $0x20] sm:$0xf] %v766
          %799 = vst [vmem:[#allocation2 + $0x24] sm:$0xf] %v767
          %800 = vst [vmem:[#allocation2 + $0x28] sm:$0xf] %v768
          %801 = vst [vmem:[#allocation2 + $0x2c] sm:$0xf] %v769
          %802 = vst [vmem:[#allocation2 + $0x30] sm:$0xf] %v770
          %803 = vst [vmem:[#allocation2 + $0x34] sm:$0xf] %v771
          %804 = vst [vmem:[#allocation2 + $0x38] sm:$0xf] %v772
          %805 = vst [vmem:[#allocation2 + $0x3c] sm:$0xf] %v773
          %806 = vst [vmem:[#allocation2 + $0x40] sm:$0xf] %v774
          %807 = vst [vmem:[#allocation2 + $0x44] sm:$0xf] %v775
          %808 = vst [vmem:[#allocation2 + $0x48] sm:$0xf] %v776
          %809 = vst [vmem:[#allocation2 + $0x4c] sm:$0xf] %v777
          %810 = vst [vmem:[#allocation2 + $0x50] sm:$0xf] %v778
          %811 = vst [vmem:[#allocation2 + $0x54] sm:$0xf] %v779
          %812 = vst [vmem:[#allocation2 + $0x58] sm:$0xf] %v780
          %813 = vst [vmem:[#allocation2 + $0x5c] sm:$0xf] %v781
          %814 = vst [vmem:[#allocation2 + $0x60] sm:$0xf] %v782
          %815 = vst [vmem:[#allocation2 + $0x64] sm:$0xf] %v783
          %816 = vst [vmem:[#allocation2 + $0x68] sm:$0xf] %v784
          %817 = vst [vmem:[#allocation2 + $0x6c] sm:$0xf] %v785
          %818 = vst [vmem:[#allocation2 + $0x70] sm:$0xf] %v786
          %819 = vst [vmem:[#allocation2 + $0x74] sm:$0xf] %v787
          %820 = vst [vmem:[#allocation2 + $0x78] sm:$0xf] %v788
          %821 = vst [vmem:[#allocation2 + $0x7c] sm:$0xf] %v789
          %v822 = vpack.c.bf16 %v679, %v679
          %v823 = vpack.c.bf16 %v681, %v681
          %v824 = vpack.c.bf16 %v684, %v684
          %v825 = vpack.c.bf16 %v686, %v686
          %v826 = vpack.c.bf16 %v689, %v689
          %v827 = vpack.c.bf16 %v691, %v691
          %v828 = vpack.c.bf16 %v694, %v694
          %v829 = vpack.c.bf16 %v696, %v696
          %v830 = vpack.c.bf16 %v699, %v699
          %v831 = vpack.c.bf16 %v701, %v701
          %v832 = vpack.c.bf16 %v704, %v704
          %v833 = vpack.c.bf16 %v706, %v706
          %v834 = vpack.c.bf16 %v709, %v709
          %v835 = vpack.c.bf16 %v711, %v711
          %v836 = vpack.c.bf16 %v714, %v714
          %v837 = vpack.c.bf16 %v716, %v716
          %v838 = vpack.c.bf16 %v719, %v719
          %v839 = vpack.c.bf16 %v721, %v721
          %v840 = vpack.c.bf16 %v724, %v724
          %v841 = vpack.c.bf16 %v726, %v726
          %v842 = vpack.c.bf16 %v729, %v729
          %v843 = vpack.c.bf16 %v731, %v731
          %v844 = vpack.c.bf16 %v734, %v734
          %v845 = vpack.c.bf16 %v736, %v736
          %v846 = vpack.c.bf16 %v739, %v739
          %v847 = vpack.c.bf16 %v741, %v741
          %v848 = vpack.c.bf16 %v744, %v744
          %v849 = vpack.c.bf16 %v746, %v746
          %v850 = vpack.c.bf16 %v749, %v749
          %v851 = vpack.c.bf16 %v751, %v751
          %v852 = vpack.c.bf16 %v754, %v754
          %v853 = vpack.c.bf16 %v756, %v756
          %854 = vst [vmem:[#allocation3] sm:$0xf] %v822
          %855 = vst [vmem:[#allocation3 + $0x4] sm:$0xf] %v823
          %856 = vst [vmem:[#allocation3 + $0x8] sm:$0xf] %v824
          %857 = vst [vmem:[#allocation3 + $0xc] sm:$0xf] %v825
          %858 = vst [vmem:[#allocation3 + $0x10] sm:$0xf] %v826
          %859 = vst [vmem:[#allocation3 + $0x14] sm:$0xf] %v827
          %860 = vst [vmem:[#allocation3 + $0x18] sm:$0xf] %v828
          %861 = vst [vmem:[#allocation3 + $0x1c] sm:$0xf] %v829
          %862 = vst [vmem:[#allocation3 + $0x20] sm:$0xf] %v830
          %863 = vst [vmem:[#allocation3 + $0x24] sm:$0xf] %v831
          %864 = vst [vmem:[#allocation3 + $0x28] sm:$0xf] %v832
          %865 = vst [vmem:[#allocation3 + $0x2c] sm:$0xf] %v833
          %866 = vst [vmem:[#allocation3 + $0x30] sm:$0xf] %v834
          %867 = vst [vmem:[#allocation3 + $0x34] sm:$0xf] %v835
          %868 = vst [vmem:[#allocation3 + $0x38] sm:$0xf] %v836
          %869 = vst [vmem:[#allocation3 + $0x3c] sm:$0xf] %v837
          %870 = vst [vmem:[#allocation3 + $0x40] sm:$0xf] %v838
          %871 = vst [vmem:[#allocation3 + $0x44] sm:$0xf] %v839
          %872 = vst [vmem:[#allocation3 + $0x48] sm:$0xf] %v840
          %873 = vst [vmem:[#allocation3 + $0x4c] sm:$0xf] %v841
          %874 = vst [vmem:[#allocation3 + $0x50] sm:$0xf] %v842
          %875 = vst [vmem:[#allocation3 + $0x54] sm:$0xf] %v843
          %876 = vst [vmem:[#allocation3 + $0x58] sm:$0xf] %v844
          %877 = vst [vmem:[#allocation3 + $0x5c] sm:$0xf] %v845
          %878 = vst [vmem:[#allocation3 + $0x60] sm:$0xf] %v846
          %879 = vst [vmem:[#allocation3 + $0x64] sm:$0xf] %v847
          %880 = vst [vmem:[#allocation3 + $0x68] sm:$0xf] %v848
          %881 = vst [vmem:[#allocation3 + $0x6c] sm:$0xf] %v849
          %882 = vst [vmem:[#allocation3 + $0x70] sm:$0xf] %v850
          %883 = vst [vmem:[#allocation3 + $0x74] sm:$0xf] %v851
          %884 = vst [vmem:[#allocation3 + $0x78] sm:$0xf] %v852
          %885 = vst [vmem:[#allocation3 + $0x7c] sm:$0xf] %v853
        $region72: #{tpu_custom_call.1} parent=51 // pred_fallthru
          _
        %s886 = smul.u32 %s33, 128
        %s887 = scalar_lea.vmem %s342, %s886 [#allocation5]
        %v888 = vld [vmem:[%s887] sm:$0xff]
        %v889 = vld [vmem:[%s887 + $0x8] sm:$0xff]
        %v890 = vld [vmem:[%s887 + $0x10] sm:$0xff]
        %v891 = vld [vmem:[%s887 + $0x18] sm:$0xff]
        %v892 = vld [vmem:[%s887 + $0x20] sm:$0xff]
        %v893 = vld [vmem:[%s887 + $0x28] sm:$0xff]
        %v894 = vld [vmem:[%s887 + $0x30] sm:$0xff]
        %v895 = vld [vmem:[%s887 + $0x38] sm:$0xff]
        %v896 = vld [vmem:[%s887 + $0x40] sm:$0xff]
        %v897 = vld [vmem:[%s887 + $0x48] sm:$0xff]
        %v898 = vld [vmem:[%s887 + $0x50] sm:$0xff]
        %v899 = vld [vmem:[%s887 + $0x58] sm:$0xff]
        %v900 = vld [vmem:[%s887 + $0x60] sm:$0xff]
        %v901 = vld [vmem:[%s887 + $0x68] sm:$0xff]
        %v902 = vld [vmem:[%s887 + $0x70] sm:$0xff]
        %v903 = vld [vmem:[%s887 + $0x78] sm:$0xff]
        %v904 = vpack.c.bf16 %v889, %v888
        %v905 = vpack.c.bf16 %v891, %v890
        %v906 = vpack.c.bf16 %v893, %v892
        %v907 = vpack.c.bf16 %v895, %v894
        %v908 = vpack.c.bf16 %v897, %v896
        %v909 = vpack.c.bf16 %v899, %v898
        %v910 = vpack.c.bf16 %v901, %v900
        %v911 = vpack.c.bf16 %v903, %v902
        %v912 = vld [vmem:[#allocation8] sm:$0xf]
        %v913 = vld [vmem:[#allocation8 + $0x4] sm:$0xf]
        %v914 = vld [vmem:[#allocation8 + $0x8] sm:$0xf]
        %v915 = vld [vmem:[#allocation8 + $0xc] sm:$0xf]
        %v916 = vld [vmem:[#allocation8 + $0x10] sm:$0xf]
        %v917 = vld [vmem:[#allocation8 + $0x14] sm:$0xf]
        %v918 = vld [vmem:[#allocation8 + $0x18] sm:$0xf]
        %v919 = vld [vmem:[#allocation8 + $0x1c] sm:$0xf]
        %v920 = vld [vmem:[#allocation8 + $0x20] sm:$0xf]
        %v921 = vld [vmem:[#allocation8 + $0x24] sm:$0xf]
        %v922 = vld [vmem:[#allocation8 + $0x28] sm:$0xf]
        %v923 = vld [vmem:[#allocation8 + $0x2c] sm:$0xf]
        %v924 = vld [vmem:[#allocation8 + $0x30] sm:$0xf]
        %v925 = vld [vmem:[#allocation8 + $0x34] sm:$0xf]
        %v926 = vld [vmem:[#allocation8 + $0x38] sm:$0xf]
        %v927 = vld [vmem:[#allocation8 + $0x3c] sm:$0xf]
        %v928 = vld [vmem:[%s4] sm:$0x1]
        %v930 = vperm.slane %v928, 0
        %v948 = vunpack.c.l.b16 %v912
        %v949 = vunpack.c.l.b16 %v913
        %v950 = vunpack.c.l.b16 %v914
        %v951 = vunpack.c.l.b16 %v915
        %v952 = vunpack.c.l.b16 %v916
        %v953 = vunpack.c.l.b16 %v917
        %v954 = vunpack.c.l.b16 %v918
        %v955 = vunpack.c.l.b16 %v919
        %v956 = vunpack.c.l.b16 %v920
        %v957 = vunpack.c.l.b16 %v921
        %v958 = vunpack.c.l.b16 %v922
        %v959 = vunpack.c.l.b16 %v923
        %v960 = vunpack.c.l.b16 %v924
        %v961 = vunpack.c.l.b16 %v925
        %v962 = vunpack.c.l.b16 %v926
        %v963 = vunpack.c.l.b16 %v927
        %v964 = vpack.c.b16 %v949, %v948
        %v965 = vpack.c.b16 %v951, %v950
        %v966 = vpack.c.b16 %v953, %v952
        %v967 = vpack.c.b16 %v955, %v954
        %v968 = vpack.c.b16 %v957, %v956
        %v969 = vpack.c.b16 %v959, %v958
        %v970 = vpack.c.b16 %v961, %v960
        %v971 = vpack.c.b16 %v963, %v962
        %980 = vmatpush.bf16.msra.mxu0 %v971
        %981 = vmatpush.bf16.msra.mxu0 %v970
        %982 = vmatpush.bf16.msra.mxu0 %v969
        %983 = vmatpush.bf16.msra.mxu0 %v968
        %984 = vmatpush.bf16.msra.mxu0 %v967
        %985 = vmatpush.bf16.msra.mxu0 %v966
        %986 = vmatpush.bf16.msra.mxu0 %v965
        %987 = vmatpush.bf16.msra.mxu0 %v964
        %988 = vmatmul.bf16.gmra.mxu0 %v904
        %v989 = vpop.f32.mrf.mxu0
        %v990 = vadd.f32 %v930, %v989
        %v991 = vpop.f32.mrf.mxu0
        %v992 = vadd.f32 %v930, %v991
        %993 = vmatmul.bf16.gmra.mxu0 %v905
        %v994 = vpop.f32.mrf.mxu0
        %v995 = vadd.f32 %v930, %v994
        %v996 = vpop.f32.mrf.mxu0
        %v997 = vadd.f32 %v930, %v996
        %998 = vmatmul.bf16.gmra.mxu0 %v906
        %v999 = vpop.f32.mrf.mxu0
        %v1000 = vadd.f32 %v930, %v999
        %v1001 = vpop.f32.mrf.mxu0
        %v1002 = vadd.f32 %v930, %v1001
        %1003 = vmatmul.bf16.gmra.mxu0 %v907
        %v1004 = vpop.f32.mrf.mxu0
        %v1005 = vadd.f32 %v930, %v1004
        %v1006 = vpop.f32.mrf.mxu0
        %v1007 = vadd.f32 %v930, %v1006
        %1008 = vmatmul.bf16.gmra.mxu0 %v908
        %v1009 = vpop.f32.mrf.mxu0
        %v1010 = vadd.f32 %v930, %v1009
        %v1011 = vpop.f32.mrf.mxu0
        %v1012 = vadd.f32 %v930, %v1011
        %1013 = vmatmul.bf16.gmra.mxu0 %v909
        %v1014 = vpop.f32.mrf.mxu0
        %v1015 = vadd.f32 %v930, %v1014
        %v1016 = vpop.f32.mrf.mxu0
        %v1017 = vadd.f32 %v930, %v1016
        %1018 = vmatmul.bf16.gmra.mxu0 %v910
        %v1019 = vpop.f32.mrf.mxu0
        %v1020 = vadd.f32 %v930, %v1019
        %v1021 = vpop.f32.mrf.mxu0
        %v1022 = vadd.f32 %v930, %v1021
        %1023 = vmatmul.bf16.gmra.mxu0 %v911
        %v1024 = vpop.f32.mrf.mxu0
        %v1025 = vadd.f32 %v930, %v1024
        %v1026 = vpop.f32.mrf.mxu0
        %v1027 = vadd.f32 %v930, %v1026
        %1028 = vdwg.mxu0
        %v1029 = vpack.c.bf16 %v992, %v990
        %v1030 = vpack.c.bf16 %v997, %v995
        %v1031 = vpack.c.bf16 %v1002, %v1000
        %v1032 = vpack.c.bf16 %v1007, %v1005
        %v1033 = vpack.c.bf16 %v1012, %v1010
        %v1034 = vpack.c.bf16 %v1017, %v1015
        %v1035 = vpack.c.bf16 %v1022, %v1020
        %v1036 = vpack.c.bf16 %v1027, %v1025
        %v1037 = vld [vmem:[#allocation2] sm:$0xf]
        %v1038 = vld [vmem:[#allocation2 + $0x4] sm:$0xf]
        %v1039 = vld [vmem:[#allocation2 + $0x8] sm:$0xf]
        %v1040 = vld [vmem:[#allocation2 + $0xc] sm:$0xf]
        %v1041 = vld [vmem:[#allocation2 + $0x10] sm:$0xf]
        %v1042 = vld [vmem:[#allocation2 + $0x14] sm:$0xf]
        %v1043 = vld [vmem:[#allocation2 + $0x18] sm:$0xf]
        %v1044 = vld [vmem:[#allocation2 + $0x1c] sm:$0xf]
        %v1045 = vld [vmem:[#allocation2 + $0x20] sm:$0xf]
        %v1046 = vld [vmem:[#allocation2 + $0x24] sm:$0xf]
        %v1047 = vld [vmem:[#allocation2 + $0x28] sm:$0xf]
        %v1048 = vld [vmem:[#allocation2 + $0x2c] sm:$0xf]
        %v1049 = vld [vmem:[#allocation2 + $0x30] sm:$0xf]
        %v1050 = vld [vmem:[#allocation2 + $0x34] sm:$0xf]
        %v1051 = vld [vmem:[#allocation2 + $0x38] sm:$0xf]
        %v1052 = vld [vmem:[#allocation2 + $0x3c] sm:$0xf]
        %v1053 = vld [vmem:[#allocation2 + $0x40] sm:$0xf]
        %v1054 = vld [vmem:[#allocation2 + $0x44] sm:$0xf]
        %v1055 = vld [vmem:[#allocation2 + $0x48] sm:$0xf]
        %v1056 = vld [vmem:[#allocation2 + $0x4c] sm:$0xf]
        %v1057 = vld [vmem:[#allocation2 + $0x50] sm:$0xf]
        %v1058 = vld [vmem:[#allocation2 + $0x54] sm:$0xf]
        %v1059 = vld [vmem:[#allocation2 + $0x58] sm:$0xf]
        %v1060 = vld [vmem:[#allocation2 + $0x5c] sm:$0xf]
        %v1061 = vld [vmem:[#allocation2 + $0x60] sm:$0xf]
        %v1062 = vld [vmem:[#allocation2 + $0x64] sm:$0xf]
        %v1063 = vld [vmem:[#allocation2 + $0x68] sm:$0xf]
        %v1064 = vld [vmem:[#allocation2 + $0x6c] sm:$0xf]
        %v1065 = vld [vmem:[#allocation2 + $0x70] sm:$0xf]
        %v1066 = vld [vmem:[#allocation2 + $0x74] sm:$0xf]
        %v1067 = vld [vmem:[#allocation2 + $0x78] sm:$0xf]
        %v1068 = vld [vmem:[#allocation2 + $0x7c] sm:$0xf]
        %v1101 = vunpack.c.l.b16 %v1037
        %v1102 = vunpack.c.l.b16 %v1038
        %v1103 = vunpack.c.l.b16 %v1039
        %v1104 = vunpack.c.l.b16 %v1040
        %v1105 = vunpack.c.l.b16 %v1041
        %v1106 = vunpack.c.l.b16 %v1042
        %v1107 = vunpack.c.l.b16 %v1043
        %v1108 = vunpack.c.l.b16 %v1044
        %v1109 = vunpack.c.l.b16 %v1045
        %v1110 = vunpack.c.l.b16 %v1046
        %v1111 = vunpack.c.l.b16 %v1047
        %v1112 = vunpack.c.l.b16 %v1048
        %v1113 = vunpack.c.l.b16 %v1049
        %v1114 = vunpack.c.l.b16 %v1050
        %v1115 = vunpack.c.l.b16 %v1051
        %v1116 = vunpack.c.l.b16 %v1052
        %v1117 = vunpack.c.l.b16 %v1053
        %v1118 = vunpack.c.l.b16 %v1054
        %v1119 = vunpack.c.l.b16 %v1055
        %v1120 = vunpack.c.l.b16 %v1056
        %v1121 = vunpack.c.l.b16 %v1057
        %v1122 = vunpack.c.l.b16 %v1058
        %v1123 = vunpack.c.l.b16 %v1059
        %v1124 = vunpack.c.l.b16 %v1060
        %v1125 = vunpack.c.l.b16 %v1061
        %v1126 = vunpack.c.l.b16 %v1062
        %v1127 = vunpack.c.l.b16 %v1063
        %v1128 = vunpack.c.l.b16 %v1064
        %v1129 = vunpack.c.l.b16 %v1065
        %v1130 = vunpack.c.l.b16 %v1066
        %v1131 = vunpack.c.l.b16 %v1067
        %v1132 = vunpack.c.l.b16 %v1068
        %v1133 = vpack.c.b16 %v1102, %v1101
        %v1134 = vpack.c.b16 %v1104, %v1103
        %v1135 = vpack.c.b16 %v1106, %v1105
        %v1136 = vpack.c.b16 %v1108, %v1107
        %v1137 = vpack.c.b16 %v1110, %v1109
        %v1138 = vpack.c.b16 %v1112, %v1111
        %v1139 = vpack.c.b16 %v1114, %v1113
        %v1140 = vpack.c.b16 %v1116, %v1115
        %v1141 = vpack.c.b16 %v1118, %v1117
        %v1142 = vpack.c.b16 %v1120, %v1119
        %v1143 = vpack.c.b16 %v1122, %v1121
        %v1144 = vpack.c.b16 %v1124, %v1123
        %v1145 = vpack.c.b16 %v1126, %v1125
        %v1146 = vpack.c.b16 %v1128, %v1127
        %v1147 = vpack.c.b16 %v1130, %v1129
        %v1148 = vpack.c.b16 %v1132, %v1131
        %1165 = vmatpush.bf16.xpose.msra.mxu0 %v1140
        %1166 = vmatpush.bf16.xpose.msra.mxu0 %v1139
        %1167 = vmatpush.bf16.xpose.msra.mxu0 %v1138
        %1168 = vmatpush.bf16.xpose.msra.mxu0 %v1137
        %1169 = vmatpush.bf16.xpose.msra.mxu0 %v1136
        %1170 = vmatpush.bf16.xpose.msra.mxu0 %v1135
        %1171 = vmatpush.bf16.xpose.msra.mxu0 %v1134
        %1172 = vmatpush.bf16.xpose.msra.mxu0 %v1133
        %1173 = vmatmul.bf16.gmra.mxu0 %v1029
        %v1174 = vpop.f32.mrf.mxu0
        %v1175 = vadd.f32 0.0, %v1174
        %v1176 = vpop.f32.mrf.mxu0
        %v1177 = vadd.f32 0.0, %v1176
        %1178 = vmatmul.bf16.gmra.mxu0 %v1030
        %v1179 = vpop.f32.mrf.mxu0
        %v1180 = vadd.f32 0.0, %v1179
        %v1181 = vpop.f32.mrf.mxu0
        %v1182 = vadd.f32 0.0, %v1181
        %1183 = vmatmul.bf16.gmra.mxu0 %v1031
        %v1184 = vpop.f32.mrf.mxu0
        %v1185 = vadd.f32 0.0, %v1184
        %v1186 = vpop.f32.mrf.mxu0
        %v1187 = vadd.f32 0.0, %v1186
        %1188 = vmatmul.bf16.gmra.mxu0 %v1032
        %v1189 = vpop.f32.mrf.mxu0
        %v1190 = vadd.f32 0.0, %v1189
        %v1191 = vpop.f32.mrf.mxu0
        %v1192 = vadd.f32 0.0, %v1191
        %1193 = vmatmul.bf16.gmra.mxu0 %v1033
        %v1194 = vpop.f32.mrf.mxu0
        %v1195 = vadd.f32 0.0, %v1194
        %v1196 = vpop.f32.mrf.mxu0
        %v1197 = vadd.f32 0.0, %v1196
        %1198 = vmatmul.bf16.gmra.mxu0 %v1034
        %v1199 = vpop.f32.mrf.mxu0
        %v1200 = vadd.f32 0.0, %v1199
        %v1201 = vpop.f32.mrf.mxu0
        %v1202 = vadd.f32 0.0, %v1201
        %1203 = vmatmul.bf16.gmra.mxu0 %v1035
        %v1204 = vpop.f32.mrf.mxu0
        %v1205 = vadd.f32 0.0, %v1204
        %v1206 = vpop.f32.mrf.mxu0
        %v1207 = vadd.f32 0.0, %v1206
        %1208 = vmatmul.bf16.gmra.mxu0 %v1036
        %v1209 = vpop.f32.mrf.mxu0
        %v1210 = vadd.f32 0.0, %v1209
        %v1211 = vpop.f32.mrf.mxu0
        %v1212 = vadd.f32 0.0, %v1211
        %1213 = vdwg.mxu0
        %1214 = vmatpush.bf16.xpose.msra.mxu0 %v1148
        %1215 = vmatpush.bf16.xpose.msra.mxu0 %v1147
        %1216 = vmatpush.bf16.xpose.msra.mxu0 %v1146
        %1217 = vmatpush.bf16.xpose.msra.mxu0 %v1145
        %1218 = vmatpush.bf16.xpose.msra.mxu0 %v1144
        %1219 = vmatpush.bf16.xpose.msra.mxu0 %v1143
        %1220 = vmatpush.bf16.xpose.msra.mxu0 %v1142
        %1221 = vmatpush.bf16.xpose.msra.mxu0 %v1141
        %1222 = vmatmul.bf16.gmra.mxu0 %v1029
        %v1223 = vpop.f32.mrf.mxu0
        %v1224 = vadd.f32 0.0, %v1223
        %v1225 = vpop.f32.mrf.mxu0
        %v1226 = vadd.f32 0.0, %v1225
        %1227 = vmatmul.bf16.gmra.mxu0 %v1030
        %v1228 = vpop.f32.mrf.mxu0
        %v1229 = vadd.f32 0.0, %v1228
        %v1230 = vpop.f32.mrf.mxu0
        %v1231 = vadd.f32 0.0, %v1230
        %1232 = vmatmul.bf16.gmra.mxu0 %v1031
        %v1233 = vpop.f32.mrf.mxu0
        %v1234 = vadd.f32 0.0, %v1233
        %v1235 = vpop.f32.mrf.mxu0
        %v1236 = vadd.f32 0.0, %v1235
        %1237 = vmatmul.bf16.gmra.mxu0 %v1032
        %v1238 = vpop.f32.mrf.mxu0
        %v1239 = vadd.f32 0.0, %v1238
        %v1240 = vpop.f32.mrf.mxu0
        %v1241 = vadd.f32 0.0, %v1240
        %1242 = vmatmul.bf16.gmra.mxu0 %v1033
        %v1243 = vpop.f32.mrf.mxu0
        %v1244 = vadd.f32 0.0, %v1243
        %v1245 = vpop.f32.mrf.mxu0
        %v1246 = vadd.f32 0.0, %v1245
        %1247 = vmatmul.bf16.gmra.mxu0 %v1034
        %v1248 = vpop.f32.mrf.mxu0
        %v1249 = vadd.f32 0.0, %v1248
        %v1250 = vpop.f32.mrf.mxu0
        %v1251 = vadd.f32 0.0, %v1250
        %1252 = vmatmul.bf16.gmra.mxu0 %v1035
        %v1253 = vpop.f32.mrf.mxu0
        %v1254 = vadd.f32 0.0, %v1253
        %v1255 = vpop.f32.mrf.mxu0
        %v1256 = vadd.f32 0.0, %v1255
        %1257 = vmatmul.bf16.gmra.mxu0 %v1036
        %v1258 = vpop.f32.mrf.mxu0
        %v1259 = vadd.f32 0.0, %v1258
        %v1260 = vpop.f32.mrf.mxu0
        %v1261 = vadd.f32 0.0, %v1260
        %1262 = vdwg.mxu0
        %v1263 = vmax.f32 %v1175, %v1224
        %1264 = vmax.xlane.f32.xlu0 %v1263
        %v1265 = vpop.xlane.xlu0 %1264
        %v1266 = vmax.f32 %v1177, %v1226
        %1267 = vmax.xlane.f32.xlu0 %v1266
        %v1268 = vpop.xlane.xlu0 %1267
        %v1269 = vmax.f32 %v1180, %v1229
        %1270 = vmax.xlane.f32.xlu0 %v1269
        %v1271 = vpop.xlane.xlu0 %1270
        %v1272 = vmax.f32 %v1182, %v1231
        %1273 = vmax.xlane.f32.xlu0 %v1272
        %v1274 = vpop.xlane.xlu0 %1273
        %v1275 = vmax.f32 %v1185, %v1234
        %1276 = vmax.xlane.f32.xlu0 %v1275
        %v1277 = vpop.xlane.xlu0 %1276
        %v1278 = vmax.f32 %v1187, %v1236
        %1279 = vmax.xlane.f32.xlu0 %v1278
        %v1280 = vpop.xlane.xlu0 %1279
        %v1281 = vmax.f32 %v1190, %v1239
        %1282 = vmax.xlane.f32.xlu0 %v1281
        %v1283 = vpop.xlane.xlu0 %1282
        %v1284 = vmax.f32 %v1192, %v1241
        %1285 = vmax.xlane.f32.xlu0 %v1284
        %v1286 = vpop.xlane.xlu0 %1285
        %v1287 = vmax.f32 %v1195, %v1244
        %1288 = vmax.xlane.f32.xlu0 %v1287
        %v1289 = vpop.xlane.xlu0 %1288
        %v1290 = vmax.f32 %v1197, %v1246
        %1291 = vmax.xlane.f32.xlu0 %v1290
        %v1292 = vpop.xlane.xlu0 %1291
        %v1293 = vmax.f32 %v1200, %v1249
        %1294 = vmax.xlane.f32.xlu0 %v1293
        %v1295 = vpop.xlane.xlu0 %1294
        %v1296 = vmax.f32 %v1202, %v1251
        %1297 = vmax.xlane.f32.xlu0 %v1296
        %v1298 = vpop.xlane.xlu0 %1297
        %v1299 = vmax.f32 %v1205, %v1254
        %1300 = vmax.xlane.f32.xlu0 %v1299
        %v1301 = vpop.xlane.xlu0 %1300
        %v1302 = vmax.f32 %v1207, %v1256
        %1303 = vmax.xlane.f32.xlu0 %v1302
        %v1304 = vpop.xlane.xlu0 %1303
        %v1305 = vmax.f32 %v1210, %v1259
        %1306 = vmax.xlane.f32.xlu0 %v1305
        %v1307 = vpop.xlane.xlu0 %1306
        %v1308 = vmax.f32 %v1212, %v1261
        %1309 = vmax.xlane.f32.xlu0 %v1308
        %v1310 = vpop.xlane.xlu0 %1309
        %v1311 = vsub.f32 %v1175, %v1265
        %v1312 = vsub.f32 %v1224, %v1265
        %v1313 = vsub.f32 %v1177, %v1268
        %v1314 = vsub.f32 %v1226, %v1268
        %v1315 = vsub.f32 %v1180, %v1271
        %v1316 = vsub.f32 %v1229, %v1271
        %v1317 = vsub.f32 %v1182, %v1274
        %v1318 = vsub.f32 %v1231, %v1274
        %v1319 = vsub.f32 %v1185, %v1277
        %v1320 = vsub.f32 %v1234, %v1277
        %v1321 = vsub.f32 %v1187, %v1280
        %v1322 = vsub.f32 %v1236, %v1280
        %v1323 = vsub.f32 %v1190, %v1283
        %v1324 = vsub.f32 %v1239, %v1283
        %v1325 = vsub.f32 %v1192, %v1286
        %v1326 = vsub.f32 %v1241, %v1286
        %v1327 = vsub.f32 %v1195, %v1289
        %v1328 = vsub.f32 %v1244, %v1289
        %v1329 = vsub.f32 %v1197, %v1292
        %v1330 = vsub.f32 %v1246, %v1292
        %v1331 = vsub.f32 %v1200, %v1295
        %v1332 = vsub.f32 %v1249, %v1295
        %v1333 = vsub.f32 %v1202, %v1298
        %v1334 = vsub.f32 %v1251, %v1298
        %v1335 = vsub.f32 %v1205, %v1301
        %v1336 = vsub.f32 %v1254, %v1301
        %v1337 = vsub.f32 %v1207, %v1304
        %v1338 = vsub.f32 %v1256, %v1304
        %v1339 = vsub.f32 %v1210, %v1307
        %v1340 = vsub.f32 %v1259, %v1307
        %v1341 = vsub.f32 %v1212, %v1310
        %v1342 = vsub.f32 %v1261, %v1310
        %v1343 = vmul.f32 %v1311, 1.442695
        %v1344 = vpow.pop %v1343
        %v1345 = vmul.f32 %v1312, 1.442695
        %v1346 = vpow.pop %v1345
        %v1347 = vmul.f32 %v1313, 1.442695
        %v1348 = vpow.pop %v1347
        %v1349 = vmul.f32 %v1314, 1.442695
        %v1350 = vpow.pop %v1349
        %v1351 = vmul.f32 %v1315, 1.442695
        %v1352 = vpow.pop %v1351
        %v1353 = vmul.f32 %v1316, 1.442695
        %v1354 = vpow.pop %v1353
        %v1355 = vmul.f32 %v1317, 1.442695
        %v1356 = vpow.pop %v1355
        %v1357 = vmul.f32 %v1318, 1.442695
        %v1358 = vpow.pop %v1357
        %v1359 = vmul.f32 %v1319, 1.442695
        %v1360 = vpow.pop %v1359
        %v1361 = vmul.f32 %v1320, 1.442695
        %v1362 = vpow.pop %v1361
        %v1363 = vmul.f32 %v1321, 1.442695
        %v1364 = vpow.pop %v1363
        %v1365 = vmul.f32 %v1322, 1.442695
        %v1366 = vpow.pop %v1365
        %v1367 = vmul.f32 %v1323, 1.442695
        %v1368 = vpow.pop %v1367
        %v1369 = vmul.f32 %v1324, 1.442695
        %v1370 = vpow.pop %v1369
        %v1371 = vmul.f32 %v1325, 1.442695
        %v1372 = vpow.pop %v1371
        %v1373 = vmul.f32 %v1326, 1.442695
        %v1374 = vpow.pop %v1373
        %v1375 = vmul.f32 %v1327, 1.442695
        %v1376 = vpow.pop %v1375
        %v1377 = vmul.f32 %v1328, 1.442695
        %v1378 = vpow.pop %v1377
        %v1379 = vmul.f32 %v1329, 1.442695
        %v1380 = vpow.pop %v1379
        %v1381 = vmul.f32 %v1330, 1.442695
        %v1382 = vpow.pop %v1381
        %v1383 = vmul.f32 %v1331, 1.442695
        %v1384 = vpow.pop %v1383
        %v1385 = vmul.f32 %v1332, 1.442695
        %v1386 = vpow.pop %v1385
        %v1387 = vmul.f32 %v1333, 1.442695
        %v1388 = vpow.pop %v1387
        %v1389 = vmul.f32 %v1334, 1.442695
        %v1390 = vpow.pop %v1389
        %v1391 = vmul.f32 %v1335, 1.442695
        %v1392 = vpow.pop %v1391
        %v1393 = vmul.f32 %v1336, 1.442695
        %v1394 = vpow.pop %v1393
        %v1395 = vmul.f32 %v1337, 1.442695
        %v1396 = vpow.pop %v1395
        %v1397 = vmul.f32 %v1338, 1.442695
        %v1398 = vpow.pop %v1397
        %v1399 = vmul.f32 %v1339, 1.442695
        %v1400 = vpow.pop %v1399
        %v1401 = vmul.f32 %v1340, 1.442695
        %v1402 = vpow.pop %v1401
        %v1403 = vmul.f32 %v1341, 1.442695
        %v1404 = vpow.pop %v1403
        %v1405 = vmul.f32 %v1342, 1.442695
        %v1406 = vpow.pop %v1405
        %v1407 = vadd.f32 %v1344, %v1346
        %1408 = vadd.xlane.f32.xlu0 %v1407
        %v1409 = vpop.xlane.xlu0 %1408
        %v1410 = vadd.f32 %v1348, %v1350
        %1411 = vadd.xlane.f32.xlu0 %v1410
        %v1412 = vpop.xlane.xlu0 %1411
        %v1413 = vadd.f32 %v1352, %v1354
        %1414 = vadd.xlane.f32.xlu0 %v1413
        %v1415 = vpop.xlane.xlu0 %1414
        %v1416 = vadd.f32 %v1356, %v1358
        %1417 = vadd.xlane.f32.xlu0 %v1416
        %v1418 = vpop.xlane.xlu0 %1417
        %v1419 = vadd.f32 %v1360, %v1362
        %1420 = vadd.xlane.f32.xlu0 %v1419
        %v1421 = vpop.xlane.xlu0 %1420
        %v1422 = vadd.f32 %v1364, %v1366
        %1423 = vadd.xlane.f32.xlu0 %v1422
        %v1424 = vpop.xlane.xlu0 %1423
        %v1425 = vadd.f32 %v1368, %v1370
        %1426 = vadd.xlane.f32.xlu0 %v1425
        %v1427 = vpop.xlane.xlu0 %1426
        %v1428 = vadd.f32 %v1372, %v1374
        %1429 = vadd.xlane.f32.xlu0 %v1428
        %v1430 = vpop.xlane.xlu0 %1429
        %v1431 = vadd.f32 %v1376, %v1378
        %1432 = vadd.xlane.f32.xlu0 %v1431
        %v1433 = vpop.xlane.xlu0 %1432
        %v1434 = vadd.f32 %v1380, %v1382
        %1435 = vadd.xlane.f32.xlu0 %v1434
        %v1436 = vpop.xlane.xlu0 %1435
        %v1437 = vadd.f32 %v1384, %v1386
        %1438 = vadd.xlane.f32.xlu0 %v1437
        %v1439 = vpop.xlane.xlu0 %1438
        %v1440 = vadd.f32 %v1388, %v1390
        %1441 = vadd.xlane.f32.xlu0 %v1440
        %v1442 = vpop.xlane.xlu0 %1441
        %v1443 = vadd.f32 %v1392, %v1394
        %1444 = vadd.xlane.f32.xlu0 %v1443
        %v1445 = vpop.xlane.xlu0 %1444
        %v1446 = vadd.f32 %v1396, %v1398
        %1447 = vadd.xlane.f32.xlu0 %v1446
        %v1448 = vpop.xlane.xlu0 %1447
        %v1449 = vadd.f32 %v1400, %v1402
        %1450 = vadd.xlane.f32.xlu0 %v1449
        %v1451 = vpop.xlane.xlu0 %1450
        %v1452 = vadd.f32 %v1404, %v1406
        %1453 = vadd.xlane.f32.xlu0 %v1452
        %v1454 = vpop.xlane.xlu0 %1453
        %v1455 = vpack.c.bf16 %v1348, %v1344
        %v1456 = vpack.c.bf16 %v1350, %v1346
        %v1457 = vpack.c.bf16 %v1356, %v1352
        %v1458 = vpack.c.bf16 %v1358, %v1354
        %v1459 = vpack.c.bf16 %v1364, %v1360
        %v1460 = vpack.c.bf16 %v1366, %v1362
        %v1461 = vpack.c.bf16 %v1372, %v1368
        %v1462 = vpack.c.bf16 %v1374, %v1370
        %v1463 = vpack.c.bf16 %v1380, %v1376
        %v1464 = vpack.c.bf16 %v1382, %v1378
        %v1465 = vpack.c.bf16 %v1388, %v1384
        %v1466 = vpack.c.bf16 %v1390, %v1386
        %v1467 = vpack.c.bf16 %v1396, %v1392
        %v1468 = vpack.c.bf16 %v1398, %v1394
        %v1469 = vpack.c.bf16 %v1404, %v1400
        %v1470 = vpack.c.bf16 %v1406, %v1402
        %v1471 = vld [vmem:[#allocation3] sm:$0xf]
        %v1472 = vld [vmem:[#allocation3 + $0x4] sm:$0xf]
        %v1473 = vld [vmem:[#allocation3 + $0x8] sm:$0xf]
        %v1474 = vld [vmem:[#allocation3 + $0xc] sm:$0xf]
        %v1475 = vld [vmem:[#allocation3 + $0x10] sm:$0xf]
        %v1476 = vld [vmem:[#allocation3 + $0x14] sm:$0xf]
        %v1477 = vld [vmem:[#allocation3 + $0x18] sm:$0xf]
        %v1478 = vld [vmem:[#allocation3 + $0x1c] sm:$0xf]
        %v1479 = vld [vmem:[#allocation3 + $0x20] sm:$0xf]
        %v1480 = vld [vmem:[#allocation3 + $0x24] sm:$0xf]
        %v1481 = vld [vmem:[#allocation3 + $0x28] sm:$0xf]
        %v1482 = vld [vmem:[#allocation3 + $0x2c] sm:$0xf]
        %v1483 = vld [vmem:[#allocation3 + $0x30] sm:$0xf]
        %v1484 = vld [vmem:[#allocation3 + $0x34] sm:$0xf]
        %v1485 = vld [vmem:[#allocation3 + $0x38] sm:$0xf]
        %v1486 = vld [vmem:[#allocation3 + $0x3c] sm:$0xf]
        %v1487 = vld [vmem:[#allocation3 + $0x40] sm:$0xf]
        %v1488 = vld [vmem:[#allocation3 + $0x44] sm:$0xf]
        %v1489 = vld [vmem:[#allocation3 + $0x48] sm:$0xf]
        %v1490 = vld [vmem:[#allocation3 + $0x4c] sm:$0xf]
        %v1491 = vld [vmem:[#allocation3 + $0x50] sm:$0xf]
        %v1492 = vld [vmem:[#allocation3 + $0x54] sm:$0xf]
        %v1493 = vld [vmem:[#allocation3 + $0x58] sm:$0xf]
        %v1494 = vld [vmem:[#allocation3 + $0x5c] sm:$0xf]
        %v1495 = vld [vmem:[#allocation3 + $0x60] sm:$0xf]
        %v1496 = vld [vmem:[#allocation3 + $0x64] sm:$0xf]
        %v1497 = vld [vmem:[#allocation3 + $0x68] sm:$0xf]
        %v1498 = vld [vmem:[#allocation3 + $0x6c] sm:$0xf]
        %v1499 = vld [vmem:[#allocation3 + $0x70] sm:$0xf]
        %v1500 = vld [vmem:[#allocation3 + $0x74] sm:$0xf]
        %v1501 = vld [vmem:[#allocation3 + $0x78] sm:$0xf]
        %v1502 = vld [vmem:[#allocation3 + $0x7c] sm:$0xf]
        %v1535 = vunpack.c.l.b16 %v1471
        %v1536 = vunpack.c.l.b16 %v1472
        %v1537 = vunpack.c.l.b16 %v1473
        %v1538 = vunpack.c.l.b16 %v1474
        %v1539 = vunpack.c.l.b16 %v1475
        %v1540 = vunpack.c.l.b16 %v1476
        %v1541 = vunpack.c.l.b16 %v1477
        %v1542 = vunpack.c.l.b16 %v1478
        %v1543 = vunpack.c.l.b16 %v1479
        %v1544 = vunpack.c.l.b16 %v1480
        %v1545 = vunpack.c.l.b16 %v1481
        %v1546 = vunpack.c.l.b16 %v1482
        %v1547 = vunpack.c.l.b16 %v1483
        %v1548 = vunpack.c.l.b16 %v1484
        %v1549 = vunpack.c.l.b16 %v1485
        %v1550 = vunpack.c.l.b16 %v1486
        %v1551 = vunpack.c.l.b16 %v1487
        %v1552 = vunpack.c.l.b16 %v1488
        %v1553 = vunpack.c.l.b16 %v1489
        %v1554 = vunpack.c.l.b16 %v1490
        %v1555 = vunpack.c.l.b16 %v1491
        %v1556 = vunpack.c.l.b16 %v1492
        %v1557 = vunpack.c.l.b16 %v1493
        %v1558 = vunpack.c.l.b16 %v1494
        %v1559 = vunpack.c.l.b16 %v1495
        %v1560 = vunpack.c.l.b16 %v1496
        %v1561 = vunpack.c.l.b16 %v1497
        %v1562 = vunpack.c.l.b16 %v1498
        %v1563 = vunpack.c.l.b16 %v1499
        %v1564 = vunpack.c.l.b16 %v1500
        %v1565 = vunpack.c.l.b16 %v1501
        %v1566 = vunpack.c.l.b16 %v1502
        %v1567 = vpack.c.b16 %v1536, %v1535
        %v1568 = vpack.c.b16 %v1538, %v1537
        %v1569 = vpack.c.b16 %v1540, %v1539
        %v1570 = vpack.c.b16 %v1542, %v1541
        %v1571 = vpack.c.b16 %v1544, %v1543
        %v1572 = vpack.c.b16 %v1546, %v1545
        %v1573 = vpack.c.b16 %v1548, %v1547
        %v1574 = vpack.c.b16 %v1550, %v1549
        %v1575 = vpack.c.b16 %v1552, %v1551
        %v1576 = vpack.c.b16 %v1554, %v1553
        %v1577 = vpack.c.b16 %v1556, %v1555
        %v1578 = vpack.c.b16 %v1558, %v1557
        %v1579 = vpack.c.b16 %v1560, %v1559
        %v1580 = vpack.c.b16 %v1562, %v1561
        %v1581 = vpack.c.b16 %v1564, %v1563
        %v1582 = vpack.c.b16 %v1566, %v1565
        %1599 = vmatpush.bf16.msra.mxu0 %v1574
        %1600 = vmatpush.bf16.msra.mxu0 %v1573
        %1601 = vmatpush.bf16.msra.mxu0 %v1572
        %1602 = vmatpush.bf16.msra.mxu0 %v1571
        %1603 = vmatpush.bf16.msra.mxu0 %v1570
        %1604 = vmatpush.bf16.msra.mxu0 %v1569
        %1605 = vmatpush.bf16.msra.mxu0 %v1568
        %1606 = vmatpush.bf16.msra.mxu0 %v1567
        %1607 = vmatmul.bf16.gmra.mxu0 %v1455
        %v1608 = vpop.f32.mrf.mxu0
        %v1609 = vadd.f32 0.0, %v1608
        %v1610 = vpop.f32.mrf.mxu0
        %v1611 = vadd.f32 0.0, %v1610
        %1612 = vmatmul.bf16.gmra.mxu0 %v1457
        %v1613 = vpop.f32.mrf.mxu0
        %v1614 = vadd.f32 0.0, %v1613
        %v1615 = vpop.f32.mrf.mxu0
        %v1616 = vadd.f32 0.0, %v1615
        %1617 = vmatmul.bf16.gmra.mxu0 %v1459
        %v1618 = vpop.f32.mrf.mxu0
        %v1619 = vadd.f32 0.0, %v1618
        %v1620 = vpop.f32.mrf.mxu0
        %v1621 = vadd.f32 0.0, %v1620
        %1622 = vmatmul.bf16.gmra.mxu0 %v1461
        %v1623 = vpop.f32.mrf.mxu0
        %v1624 = vadd.f32 0.0, %v1623
        %v1625 = vpop.f32.mrf.mxu0
        %v1626 = vadd.f32 0.0, %v1625
        %1627 = vmatmul.bf16.gmra.mxu0 %v1463
        %v1628 = vpop.f32.mrf.mxu0
        %v1629 = vadd.f32 0.0, %v1628
        %v1630 = vpop.f32.mrf.mxu0
        %v1631 = vadd.f32 0.0, %v1630
        %1632 = vmatmul.bf16.gmra.mxu0 %v1465
        %v1633 = vpop.f32.mrf.mxu0
        %v1634 = vadd.f32 0.0, %v1633
        %v1635 = vpop.f32.mrf.mxu0
        %v1636 = vadd.f32 0.0, %v1635
        %1637 = vmatmul.bf16.gmra.mxu0 %v1467
        %v1638 = vpop.f32.mrf.mxu0
        %v1639 = vadd.f32 0.0, %v1638
        %v1640 = vpop.f32.mrf.mxu0
        %v1641 = vadd.f32 0.0, %v1640
        %1642 = vmatmul.bf16.gmra.mxu0 %v1469
        %v1643 = vpop.f32.mrf.mxu0
        %v1644 = vadd.f32 0.0, %v1643
        %v1645 = vpop.f32.mrf.mxu0
        %v1646 = vadd.f32 0.0, %v1645
        %1647 = vdwg.mxu0
        %1648 = vmatpush.bf16.msra.mxu0 %v1582
        %1649 = vmatpush.bf16.msra.mxu0 %v1581
        %1650 = vmatpush.bf16.msra.mxu0 %v1580
        %1651 = vmatpush.bf16.msra.mxu0 %v1579
        %1652 = vmatpush.bf16.msra.mxu0 %v1578
        %1653 = vmatpush.bf16.msra.mxu0 %v1577
        %1654 = vmatpush.bf16.msra.mxu0 %v1576
        %1655 = vmatpush.bf16.msra.mxu0 %v1575
        %1656 = vmatmul.bf16.gmra.mxu0 %v1456
        %v1657 = vpop.f32.mrf.mxu0
        %v1658 = vadd.f32 %v1609, %v1657
        %v1659 = vpop.f32.mrf.mxu0
        %v1660 = vadd.f32 %v1611, %v1659
        %1661 = vmatmul.bf16.gmra.mxu0 %v1458
        %v1662 = vpop.f32.mrf.mxu0
        %v1663 = vadd.f32 %v1614, %v1662
        %v1664 = vpop.f32.mrf.mxu0
        %v1665 = vadd.f32 %v1616, %v1664
        %1666 = vmatmul.bf16.gmra.mxu0 %v1460
        %v1667 = vpop.f32.mrf.mxu0
        %v1668 = vadd.f32 %v1619, %v1667
        %v1669 = vpop.f32.mrf.mxu0
        %v1670 = vadd.f32 %v1621, %v1669
        %1671 = vmatmul.bf16.gmra.mxu0 %v1462
        %v1672 = vpop.f32.mrf.mxu0
        %v1673 = vadd.f32 %v1624, %v1672
        %v1674 = vpop.f32.mrf.mxu0
        %v1675 = vadd.f32 %v1626, %v1674
        %1676 = vmatmul.bf16.gmra.mxu0 %v1464
        %v1677 = vpop.f32.mrf.mxu0
        %v1678 = vadd.f32 %v1629, %v1677
        %v1679 = vpop.f32.mrf.mxu0
        %v1680 = vadd.f32 %v1631, %v1679
        %1681 = vmatmul.bf16.gmra.mxu0 %v1466
        %v1682 = vpop.f32.mrf.mxu0
        %v1683 = vadd.f32 %v1634, %v1682
        %v1684 = vpop.f32.mrf.mxu0
        %v1685 = vadd.f32 %v1636, %v1684
        %1686 = vmatmul.bf16.gmra.mxu0 %v1468
        %v1687 = vpop.f32.mrf.mxu0
        %v1688 = vadd.f32 %v1639, %v1687
        %v1689 = vpop.f32.mrf.mxu0
        %v1690 = vadd.f32 %v1641, %v1689
        %1691 = vmatmul.bf16.gmra.mxu0 %v1470
        %v1692 = vpop.f32.mrf.mxu0
        %v1693 = vadd.f32 %v1644, %v1692
        %v1694 = vpop.f32.mrf.mxu0
        %v1695 = vadd.f32 %v1646, %v1694
        %1696 = vdwg.mxu0
        %v1697 = vrcp.pop %v1409
        %v1698 = vrcp.pop %v1412
        %v1699 = vrcp.pop %v1415
        %v1700 = vrcp.pop %v1418
        %v1701 = vrcp.pop %v1421
        %v1702 = vrcp.pop %v1424
        %v1703 = vrcp.pop %v1427
        %v1704 = vrcp.pop %v1430
        %v1705 = vrcp.pop %v1433
        %v1706 = vrcp.pop %v1436
        %v1707 = vrcp.pop %v1439
        %v1708 = vrcp.pop %v1442
        %v1709 = vrcp.pop %v1445
        %v1710 = vrcp.pop %v1448
        %v1711 = vrcp.pop %v1451
        %v1712 = vrcp.pop %v1454
        %v1713 = vmul.f32 %v1658, %v1697
        %v1714 = vmul.f32 %v1660, %v1698
        %v1715 = vmul.f32 %v1663, %v1699
        %v1716 = vmul.f32 %v1665, %v1700
        %v1717 = vmul.f32 %v1668, %v1701
        %v1718 = vmul.f32 %v1670, %v1702
        %v1719 = vmul.f32 %v1673, %v1703
        %v1720 = vmul.f32 %v1675, %v1704
        %v1721 = vmul.f32 %v1678, %v1705
        %v1722 = vmul.f32 %v1680, %v1706
        %v1723 = vmul.f32 %v1683, %v1707
        %v1724 = vmul.f32 %v1685, %v1708
        %v1725 = vmul.f32 %v1688, %v1709
        %v1726 = vmul.f32 %v1690, %v1710
        %v1727 = vmul.f32 %v1693, %v1711
        %v1728 = vmul.f32 %v1695, %v1712
        %s1729 = sld [smem:[#allocation4]]
        %v1730 = vstv %s1729
        %v1731 = vmul.f32 %v1730, %v1713
        %v1732 = vmul.f32 %v1730, %v1714
        %v1733 = vmul.f32 %v1730, %v1715
        %v1734 = vmul.f32 %v1730, %v1716
        %v1735 = vmul.f32 %v1730, %v1717
        %v1736 = vmul.f32 %v1730, %v1718
        %v1737 = vmul.f32 %v1730, %v1719
        %v1738 = vmul.f32 %v1730, %v1720
        %v1739 = vmul.f32 %v1730, %v1721
        %v1740 = vmul.f32 %v1730, %v1722
        %v1741 = vmul.f32 %v1730, %v1723
        %v1742 = vmul.f32 %v1730, %v1724
        %v1743 = vmul.f32 %v1730, %v1725
        %v1744 = vmul.f32 %v1730, %v1726
        %v1745 = vmul.f32 %v1730, %v1727
        %v1746 = vmul.f32 %v1730, %v1728
        %v1747 = vadd.f32 %v1731, %v888
        %v1748 = vadd.f32 %v1732, %v889
        %v1749 = vadd.f32 %v1733, %v890
        %v1750 = vadd.f32 %v1734, %v891
        %v1751 = vadd.f32 %v1735, %v892
        %v1752 = vadd.f32 %v1736, %v893
        %v1753 = vadd.f32 %v1737, %v894
        %v1754 = vadd.f32 %v1738, %v895
        %v1755 = vadd.f32 %v1739, %v896
        %v1756 = vadd.f32 %v1740, %v897
        %v1757 = vadd.f32 %v1741, %v898
        %v1758 = vadd.f32 %v1742, %v899
        %v1759 = vadd.f32 %v1743, %v900
        %v1760 = vadd.f32 %v1744, %v901
        %v1761 = vadd.f32 %v1745, %v902
        %v1762 = vadd.f32 %v1746, %v903
        %1763 = vst [vmem:[%s390] sm:$0xff] %v1747
        %1764 = vst [vmem:[%s390 + $0x8] sm:$0xff] %v1748
        %1765 = vst [vmem:[%s390 + $0x10] sm:$0xff] %v1749
        %1766 = vst [vmem:[%s390 + $0x18] sm:$0xff] %v1750
        %1767 = vst [vmem:[%s390 + $0x20] sm:$0xff] %v1751
        %1768 = vst [vmem:[%s390 + $0x28] sm:$0xff] %v1752
        %1769 = vst [vmem:[%s390 + $0x30] sm:$0xff] %v1753
        %1770 = vst [vmem:[%s390 + $0x38] sm:$0xff] %v1754
        %1771 = vst [vmem:[%s390 + $0x40] sm:$0xff] %v1755
        %1772 = vst [vmem:[%s390 + $0x48] sm:$0xff] %v1756
        %1773 = vst [vmem:[%s390 + $0x50] sm:$0xff] %v1757
        %1774 = vst [vmem:[%s390 + $0x58] sm:$0xff] %v1758
        %1775 = vst [vmem:[%s390 + $0x60] sm:$0xff] %v1759
        %1776 = vst [vmem:[%s390 + $0x68] sm:$0xff] %v1760
        %1777 = vst [vmem:[%s390 + $0x70] sm:$0xff] %v1761
        %1778 = vst [vmem:[%s390 + $0x78] sm:$0xff] %v1762
        %s1779 = sand.u32 %s223, 1
        %s1780 = scalar_lea.sflag [#allocation7], %s1779
        %s1781 = sand.u32 %s223, 1
        %s1782 = smul.addr %s1781, 128
        %s1783 = scalar_lea.vmem [#allocation13], %s1782
        // Predicated region
        $region73: #{tpu_custom_call.1} parent=51 // pred_check
          %p1784 = pneg %p233
        $region74: #{tpu_custom_call.1} parent=51 // pred_check_branch
          %1786 = sbr.rel (%p1784) target = $region76
        $region75: #{tpu_custom_call.1} parent=51 // pred_region
          %s1787 = smul.u32 16, %s33
          %1789 = vsyncadd %s1780, 0
          %s1790 = smul.addr %s32, 32
          %s1791 = sadd.s32 %s1787, %s1790
          %s1792 = smul.addr %s1791, 8
          %s1793 = scalar_lea.hbm %s8, %s1792
          %s1794 = sshll.u32 %s1783, 4
          %s1795 = int_to_ptr.vmem [resolvable:$true] %s1794
          %s1796 = sshll.u32 %s1793, 4
          %s1797 = int_to_ptr.hbm [resolvable:$true] %s1796
          %1802 = dma.vmem_to_hbm [thread:$0]  %s1795, 2048, %s1797, %s1780, 128, 128, 8
        $region76: #{tpu_custom_call.1} parent=51 // pred_fallthru
          _
      $region52: #{tpu_custom_call.1} parent=5 // pred_fallthru
        _
      %p1803 = scmp.le.s32.totalorder 2, %s23
      // Predicated region
      $region77: #{tpu_custom_call.1} parent=5 // pred_check
        %p1804 = pneg %p1803
      $region78: #{tpu_custom_call.1} parent=5 // pred_check_branch
        %1806 = sbr.rel (%p1804) target = $region80
      $region79: #{tpu_custom_call.1} parent=5 // pred_region
        %s1807 = ssub.s32 %s23, 2
        // Predicated region
        $region81: #{tpu_custom_call.1} parent=79 // pred_check
          %p1808 = pneg %p239
        $region82: #{tpu_custom_call.1} parent=79 // pred_check_branch
          %1810 = sbr.rel (%p1808) target = $region84
        $region83: #{tpu_custom_call.1} parent=79 // pred_region
          %s1811 = sand.u32 %s224, 1
          %s1812 = scalar_lea.sflag [#allocation7], %s1811
          %s1813 = sand.u32 %s224, 1
          %s1814 = smul.addr %s1813, 128
          %s1815 = scalar_lea.vmem [#allocation13], %s1814
          %1817 = dma.done %s1812, 2048
        $region84: #{tpu_custom_call.1} parent=79 // pred_fallthru
          _
      $region80: #{tpu_custom_call.1} parent=5 // pred_fallthru
        _
    $region6: #{tpu_custom_call.1} parent=1 // loop_footer
      %s27 = sadd.s32 1, %s23
    $region7: #{tpu_custom_call.1} parent=1 // loop_footer_branch
      %22 = sbr.rel target = $region3
    $region8: #{tpu_custom_call.1} parent=1 // loop_exit
      _
    %1818 = vsyncpa [#allocation6], 1
    %s1819 = scalar_lea.sflag [#allocation6], 1
    %1820 = vsyncpa %s1819, 1
    %1821 = vsyncpa [#allocation9], 1
    %1822 = vsyncpa [#allocation12], 1
    %1823 = vsyncpa [#allocation7], 1
    %s1824 = scalar_lea.sflag [#allocation7], 1
    %1825 = vsyncpa %s1824, 1

</llo_original>
